<compile_context>
chip_gen: v5e
topology: v5e:2x2
jax: 0.10.0
libtpu: 0.0.40
codegen_flags: <defaults>
</compile_context>

<pallas_src>
import jax
import jax.numpy as jnp
from jax.experimental import pallas as pl
from jax.experimental.pallas import tpu as pltpu

IN_FEATURES = 32 * 32 * 3  # 3072
LN_EPS = 1e-5
BN_EPS = 1e-5
_VMEM_LIMIT_BYTES = 48 * 1024 * 1024


def _default_batch_tile():
    """Per-generation batch tile: bigger tiles amortize the ~0.35us/grid-step
    overhead; kept at 256 on v5e / unknown chips to stay comfortably inside
    VMEM, 512 on v6e/v7x."""
    try:
        kind = jax.devices()[0].device_kind.lower()
    except Exception:
        return 256
    if any(tag in kind for tag in ("v6", "v7", "7x")):
        return 512
    return 256


_TILE_B = _default_batch_tile()


def _gate_kernel(x_ref, w1_ref, b1_ref, w2_ref, b2_ref, o_ref):
    """Fused forward for one batch tile. All operands resident in VMEM.
    LN affine + both BatchNorms are pre-folded into w1/b1/w2/b2."""
    x = x_ref[...].astype(jnp.float32)                       # (tb, K)

    # LayerNorm normalization (biased variance, like torch.nn.LayerNorm).
    mu = jnp.mean(x, axis=-1, keepdims=True)
    xc = x - mu
    var = jnp.mean(xc * xc, axis=-1, keepdims=True)
    xh = xc * jax.lax.rsqrt(var + LN_EPS)                    # (tb, K)

    # fc1 (+ folded LN affine + folded bn1), sigmoid.  MXU, f32 accumulation.
    h = jnp.dot(xh, w1_ref[...], preferred_element_type=jnp.float32) + b1_ref[...]
    h = 1.0 / (1.0 + jnp.exp(-h))                            # (tb, Mp)

    # fc2 (+ folded bn2), softmax over the 2 classes.
    z = jnp.dot(h, w2_ref[...], preferred_element_type=jnp.float32) + b2_ref[...]
    z = z - jnp.max(z, axis=-1, keepdims=True)
    e = jnp.exp(z)
    o_ref[...] = (e / jnp.sum(e, axis=-1, keepdims=True)).astype(o_ref.dtype)


def init_raw_params(key, m=64):
    """Raw (PyTorch-layout) parameters of the module, deterministic."""
    K = IN_FEATURES
    ks = jax.random.split(key, 14)
    b1_bound = 1.0 / jnp.sqrt(jnp.float32(K))
    b2_bound = 1.0 / jnp.sqrt(jnp.float32(m))
    u = jax.random.uniform
    return dict(
        ln_gamma=u(ks[0], (K,), jnp.float32, 0.5, 1.5),
        ln_beta=u(ks[1], (K,), jnp.float32, -0.5, 0.5),
        w1=u(ks[2], (m, K), jnp.float32, -b1_bound, b1_bound),
        b1=u(ks[3], (m,), jnp.float32, -b1_bound, b1_bound),
        bn1_gamma=u(ks[4], (m,), jnp.float32, 0.5, 1.5),
        bn1_beta=u(ks[5], (m,), jnp.float32, -0.5, 0.5),
        bn1_mean=u(ks[6], (m,), jnp.float32, -0.1, 0.1),
        bn1_var=u(ks[7], (m,), jnp.float32, 0.5, 1.5),
        w2=u(ks[8], (2, m), jnp.float32, -b2_bound, b2_bound),
        b2=u(ks[9], (2,), jnp.float32, -b2_bound, b2_bound),
        bn2_gamma=u(ks[10], (2,), jnp.float32, 0.5, 1.5),
        bn2_beta=u(ks[11], (2,), jnp.float32, -0.5, 0.5),
        bn2_mean=u(ks[12], (2,), jnp.float32, -0.1, 0.1),
        bn2_var=u(ks[13], (2,), jnp.float32, 0.5, 1.5),
    )


def fold_params(raw):
    """One-time preprocessing (outside the fwd path):
      * transpose weights to (K, M) layout,
      * fold eval-mode BatchNorm (running stats) into the preceding Linear,
      * fold the LayerNorm affine (gamma/beta) into fc1,
      * zero-pad the hidden dim m up to a multiple of 128 (lane-dense vregs)."""
    s1 = raw["bn1_gamma"] / jnp.sqrt(raw["bn1_var"] + BN_EPS)
    t1 = raw["bn1_beta"] - raw["bn1_mean"] * s1
    s2 = raw["bn2_gamma"] / jnp.sqrt(raw["bn2_var"] + BN_EPS)
    t2 = raw["bn2_beta"] - raw["bn2_mean"] * s2

    # fc1 with BN1 folded in:  z1 = xn @ w1_bn + b1_bn
    w1_bn = raw["w1"].T * s1[None, :]                 # (K, m)
    b1_bn = raw["b1"] * s1 + t1                       # (m,)

    # Fold the LN affine:  xn = x_hat * g + b
    #   xn @ w1_bn + b1_bn = x_hat @ (g[:,None] * w1_bn) + (b @ w1_bn + b1_bn)
    b1_full = b1_bn + raw["ln_beta"] @ w1_bn          # (m,)
    w1_full = raw["ln_gamma"][:, None] * w1_bn        # (K, m)

    # fc2 with BN2 folded in.
    w2_full = raw["w2"].T * s2[None, :]               # (m, 2)
    b2_full = raw["b2"] * s2 + t2                     # (2,)

    m = w1_full.shape[1]
    m_pad = ((m + 127) // 128) * 128 - m
    # Zero-pad: padded b1 columns are 0 -> sigmoid gives 0.5, which only hits
    # zeroed w2 rows, so the output is unchanged.
    w1p = jnp.pad(w1_full, ((0, 0), (0, m_pad))).astype(jnp.float32)
    b1p = jnp.pad(b1_full, (0, m_pad)).reshape(1, -1).astype(jnp.float32)
    w2p = jnp.pad(w2_full, ((0, m_pad), (0, 0))).astype(jnp.float32)
    return dict(
        w1=w1p,                                        # (K, Mp)
        b1=b1p,                                        # (1, Mp)
        w2=w2p,                                        # (Mp, 2)
        b2=b2_full.reshape(1, -1).astype(jnp.float32), # (1, 2)
    )


@jax.jit
def pfedmoe_gate_forward(x, params):
    """x: (B, 3, 32, 32) f32 (or bf16)  ->  (B, 2) softmax gate weights."""
    B = x.shape[0]
    xf = x.reshape(B, -1)                              # flatten (row-major)
    K = xf.shape[1]
    Mp = params["w1"].shape[1]
    NO = params["w2"].shape[1]
    out_shape = jax.ShapeDtypeStruct((B, NO), jnp.float32)
    operands = (xf, params["w1"], params["b1"], params["w2"], params["b2"])

    cost = pl.CostEstimate(
        flops=2 * B * K * Mp + 2 * B * Mp * NO + 8 * B * K,
        transcendentals=B * (Mp + NO + 1),
        bytes_accessed=4 * (B * K + K * Mp + Mp * NO + Mp + NO + B * NO),
    )

    tb = _TILE_B
    if B > tb:
        # Tiled, pipelined path; "parallel" grid axis so megacore chips can
        # split the work.  pl.cdiv grid: the last (boundary) block may extend
        # past B -- rows are computed independently and OOB output rows are
        # discarded by Pallas, so no wrapper-side padding copy is needed.
        return pl.pallas_call(
            _gate_kernel,
            out_shape=out_shape,
            grid=(pl.cdiv(B, tb),),
            in_specs=[
                pl.BlockSpec((tb, K), lambda i: (i, 0)),
                pl.BlockSpec((K, Mp), lambda i: (0, 0)),
                pl.BlockSpec((1, Mp), lambda i: (0, 0)),
                pl.BlockSpec((Mp, NO), lambda i: (0, 0)),
                pl.BlockSpec((1, NO), lambda i: (0, 0)),
            ],
            out_specs=pl.BlockSpec((tb, NO), lambda i: (i, 0)),
            compiler_params=pltpu.CompilerParams(
                dimension_semantics=("parallel",),
                vmem_limit_bytes=_VMEM_LIMIT_BYTES),
            cost_estimate=cost,
        )(*operands)

    # Small batch (B <= tile): grid-less call, full-array blocks in VMEM,
    # single invocation (no pipeline bookkeeping).
    return pl.pallas_call(
        _gate_kernel,
        out_shape=out_shape,
        in_specs=[pl.BlockSpec(memory_space=pltpu.MemorySpace.VMEM)] * 5,
        out_specs=pl.BlockSpec(memory_space=pltpu.MemorySpace.VMEM),
        compiler_params=pltpu.CompilerParams(
            vmem_limit_bytes=_VMEM_LIMIT_BYTES),
        cost_estimate=cost,
    )(*operands)


def reference_forward(x, raw):
    """Pure-JAX mirror of the PyTorch module (eval-mode BatchNorm)."""
    hp = jax.lax.Precision.HIGHEST
    xf = x.reshape(x.shape[0], -1).astype(jnp.float32)
    mu = xf.mean(-1, keepdims=True)
    var = ((xf - mu) ** 2).mean(-1, keepdims=True)
    xn = (xf - mu) / jnp.sqrt(var + LN_EPS) * raw["ln_gamma"] + raw["ln_beta"]
    z1 = jnp.dot(xn, raw["w1"].T, precision=hp) + raw["b1"]
    z1 = ((z1 - raw["bn1_mean"]) / jnp.sqrt(raw["bn1_var"] + BN_EPS)
          * raw["bn1_gamma"] + raw["bn1_beta"])
    h = jax.nn.sigmoid(z1)
    z2 = jnp.dot(h, raw["w2"].T, precision=hp) + raw["b2"]
    z2 = ((z2 - raw["bn2_mean"]) / jnp.sqrt(raw["bn2_var"] + BN_EPS)
          * raw["bn2_gamma"] + raw["bn2_beta"])
    return jax.nn.softmax(z2, axis=-1)


if __name__ == "__main__":
    key = jax.random.PRNGKey(0)
    k_x, k_p, k_x2 = jax.random.split(key, 3)

    raw = init_raw_params(k_p, m=64)
    params = fold_params(raw)   # one-time preprocessing, outside the fwd path

    # Small batch -> grid-less fused kernel.
    x = jax.random.normal(k_x, (2, 3, 32, 32), jnp.float32)
    y = pfedmoe_gate_forward(x, params)
    jax.block_until_ready(y)
    y_ref = reference_forward(x, raw)
    assert y.shape == (2, 2)
    assert bool(jnp.allclose(jnp.sum(y, axis=-1), 1.0, atol=1e-5))
    assert bool(jnp.allclose(y, y_ref, atol=1e-4, rtol=1e-4))

    # Larger batch, NOT a multiple of the tile -> tiled "parallel" grid path
    # with a boundary block (exercises the fixed dispatch).
    x_big = jax.random.normal(k_x2, (640, 3, 32, 32), jnp.float32)
    y_big = pfedmoe_gate_forward(x_big, params)
    jax.block_until_ready(y_big)
    y_big_ref = reference_forward(x_big, raw)
    assert y_big.shape == (640, 2)
    assert bool(jnp.allclose(jnp.sum(y_big, axis=-1), 1.0, atol=1e-5))
    assert bool(jnp.allclose(y_big, y_big_ref, atol=1e-4, rtol=1e-4))

    print("KERNEL_OK")
</pallas_src>

<mosaic_0001>
module attributes {stable_mosaic.version = 11 : i64} {
  func.func @_gate_kernel(%arg0: memref<2x3072xf32, #tpu.memory_space<vmem>>, %arg1: memref<3072x128xf32, #tpu.memory_space<vmem>>, %arg2: memref<1x128xf32, #tpu.memory_space<vmem>>, %arg3: memref<128x2xf32, #tpu.memory_space<vmem>>, %arg4: memref<1x2xf32, #tpu.memory_space<vmem>>, %arg5: memref<2x2xf32, #tpu.memory_space<vmem>>) attributes {dimension_semantics = [], scalar_prefetch = 0 : i64, scratch_operands = 0 : i64, tpu.core_type = #tpu.core_type<tc>} {
    %c0 = arith.constant 0 : index
    %c0_0 = arith.constant 0 : index
    %0 = vector.load %arg0[%c0, %c0_0] : memref<2x3072xf32, #tpu.memory_space<vmem>>, vector<2x3072xf32>
    %cst = arith.constant dense<0.000000e+00> : vector<2xf32>
    %1 = vector.multi_reduction <add>, %0, %cst [1] : vector<2x3072xf32> to vector<2xf32>
    %2 = vector.shape_cast %1 : vector<2xf32> to vector<2x1xf32>
    %cst_1 = arith.constant 3.072000e+03 : f32
    %3 = vector.broadcast %cst_1 : f32 to vector<2x1xf32>
    %4 = arith.divf %2, %3 : vector<2x1xf32>
    %5 = vector.broadcast %4 : vector<2x1xf32> to vector<2x3072xf32>
    %6 = arith.subf %0, %5 : vector<2x3072xf32>
    %7 = arith.mulf %6, %6 : vector<2x3072xf32>
    %cst_2 = arith.constant dense<0.000000e+00> : vector<2xf32>
    %8 = vector.multi_reduction <add>, %7, %cst_2 [1] : vector<2x3072xf32> to vector<2xf32>
    %9 = vector.shape_cast %8 : vector<2xf32> to vector<2x1xf32>
    %cst_3 = arith.constant 3.072000e+03 : f32
    %10 = vector.broadcast %cst_3 : f32 to vector<2x1xf32>
    %11 = arith.divf %9, %10 : vector<2x1xf32>
    %cst_4 = arith.constant 9.99999974E-6 : f32
    %12 = vector.broadcast %cst_4 : f32 to vector<2x1xf32>
    %13 = arith.addf %11, %12 : vector<2x1xf32>
    %14 = math.rsqrt %13 : vector<2x1xf32>
    %15 = vector.broadcast %14 : vector<2x1xf32> to vector<2x3072xf32>
    %16 = arith.mulf %6, %15 : vector<2x3072xf32>
    %c0_5 = arith.constant 0 : index
    %c0_6 = arith.constant 0 : index
    %17 = vector.load %arg1[%c0_5, %c0_6] : memref<3072x128xf32, #tpu.memory_space<vmem>>, vector<3072x128xf32>
    %cst_7 = arith.constant dense<0.000000e+00> : vector<2x128xf32>
    %18 = tpu.matmul %16, %17, %cst_7 {dimension_numbers = #tpu.dot_dimension_numbers<[1], [0], [0], [1], [0, 0, 1, 1], [], []>} : vector<2x3072xf32>, vector<3072x128xf32>, vector<2x128xf32> -> vector<2x128xf32>
    %c0_8 = arith.constant 0 : index
    %c0_9 = arith.constant 0 : index
    %19 = vector.load %arg2[%c0_8, %c0_9] : memref<1x128xf32, #tpu.memory_space<vmem>>, vector<1x128xf32>
    %20 = vector.broadcast %19 : vector<1x128xf32> to vector<2x128xf32>
    %21 = arith.addf %18, %20 : vector<2x128xf32>
    %cst_10 = arith.constant 0.000000e+00 : f32
    %22 = vector.broadcast %cst_10 : f32 to vector<2x128xf32>
    %23 = arith.subf %22, %21 : vector<2x128xf32>
    %24 = math.exp %23 : vector<2x128xf32>
    %cst_11 = arith.constant 1.000000e+00 : f32
    %25 = vector.broadcast %cst_11 : f32 to vector<2x128xf32>
    %26 = arith.addf %25, %24 : vector<2x128xf32>
    %cst_12 = arith.constant 1.000000e+00 : f32
    %27 = vector.broadcast %cst_12 : f32 to vector<2x128xf32>
    %28 = arith.divf %27, %26 : vector<2x128xf32>
    %c0_13 = arith.constant 0 : index
    %c0_14 = arith.constant 0 : index
    %29 = vector.load %arg3[%c0_13, %c0_14] : memref<128x2xf32, #tpu.memory_space<vmem>>, vector<128x2xf32>
    %cst_15 = arith.constant dense<0.000000e+00> : vector<2x2xf32>
    %30 = tpu.matmul %28, %29, %cst_15 {dimension_numbers = #tpu.dot_dimension_numbers<[1], [0], [0], [1], [0, 0, 1, 1], [], []>} : vector<2x128xf32>, vector<128x2xf32>, vector<2x2xf32> -> vector<2x2xf32>
    %c0_16 = arith.constant 0 : index
    %c0_17 = arith.constant 0 : index
    %31 = vector.load %arg4[%c0_16, %c0_17] : memref<1x2xf32, #tpu.memory_space<vmem>>, vector<1x2xf32>
    %32 = vector.broadcast %31 : vector<1x2xf32> to vector<2x2xf32>
    %33 = arith.addf %30, %32 : vector<2x2xf32>
    %cst_18 = arith.constant dense<0xFF800000> : vector<2xf32>
    %34 = vector.multi_reduction <maximumf>, %33, %cst_18 [1] : vector<2x2xf32> to vector<2xf32>
    %35 = vector.shape_cast %34 : vector<2xf32> to vector<2x1xf32>
    %36 = vector.broadcast %35 : vector<2x1xf32> to vector<2x2xf32>
    %37 = arith.subf %33, %36 : vector<2x2xf32>
    %38 = math.exp %37 : vector<2x2xf32>
    %cst_19 = arith.constant dense<0.000000e+00> : vector<2xf32>
    %39 = vector.multi_reduction <add>, %38, %cst_19 [1] : vector<2x2xf32> to vector<2xf32>
    %40 = vector.shape_cast %39 : vector<2xf32> to vector<2x1xf32>
    %41 = vector.broadcast %40 : vector<2x1xf32> to vector<2x2xf32>
    %42 = arith.divf %38, %41 : vector<2x2xf32>
    %c0_20 = arith.constant 0 : index
    %c0_21 = arith.constant 0 : index
    %43 = vector.load %arg5[%c0_20, %c0_21] : memref<2x2xf32, #tpu.memory_space<vmem>>, vector<2x2xf32>
    tpu.vector_store %arg5[%c0_20, %c0_21], %42 {strides = array<i32>} : memref<2x2xf32, #tpu.memory_space<vmem>>, vector<2x2xf32>,
    return
  }
}

</mosaic_0001>

<llo_original>
// kernel: pfedmoe_gate_forward.1
$region0: #{pfedmoe_gate_forward.1}
  #allocation0 [shape = 'u32[]', space=smem, size = 0x4, offset = 0x4, fixed_abs, tag = 'smem constant byte address 0x4 - core index']
  #allocation1 [shape = 'u32[72,128]{1,0:T(1,128)}', space=vmem, size = 0x9000, scoped, tag = 'internal scratch']
  %s0 = inlined_call_operand.vmem [shape: f32[2,3072], index: 0, kind: input, shape index: {}]
  %s1 = inlined_call_operand.hbm [shape: f32[3072,128], index: 1, kind: input, shape index: {}]
  %s2 = inlined_call_operand.hbm [shape: f32[1,128], index: 2, kind: input, shape index: {}]
  %s3 = inlined_call_operand.vmem [shape: f32[128,2], index: 3, kind: input, shape index: {}]
  %s4 = inlined_call_operand.hbm [shape: f32[1,2], index: 4, kind: input, shape index: {}]
  %s5 = inlined_call_operand.hbm [shape: f32[2,2], index: 5, kind: output, shape index: {}]
  %s6 = sld [smem:[#allocation0]]
  $region42: #{pfedmoe_gate_forward.1} parent=0
    _
  %s8 = ssub.s32 1, %s6
  %s9 = scalar_select 0, %s8, %s6
  $region1: #{pfedmoe_gate_forward.1} parent=0
    #allocation2 [shape = 'u8[1572864]{0}', space=vmem, size = 0x180000, scoped, tag = 'input window, operand 1, single buffered']
    #allocation3 [shape = 's32[1]{0}', space=sflag, size = 0x4, scoped, tag = 'scoped memory for pfedmoe_gate_forward.1']
    #allocation4 [shape = 's32[1]{0}', space=sflag, size = 0x4, scoped, tag = 'scoped memory for pfedmoe_gate_forward.1']
    #allocation5 [shape = 'u8[512]{0}', space=vmem, size = 0x400, scoped, tag = 'input window, operand 2, single buffered']
    #allocation6 [shape = 's32[1]{0}', space=sflag, size = 0x4, scoped, tag = 'scoped memory for pfedmoe_gate_forward.1']
    #allocation7 [shape = 'u8[512]{0}', space=vmem, size = 0x400, scoped, tag = 'input window, operand 4, single buffered']
    #allocation8 [shape = 'u8[1024]{0}', space=vmem, size = 0x400, scoped, tag = 'output window, operand 0, single buffered']
    %10 = vsyncpa [#allocation3], 0
    %11 = vsyncpa [#allocation6], 0
    %12 = vsyncpa [#allocation4], 0
    // Predicated region
    $region2: #{pfedmoe_gate_forward.1} parent=1 // pred_check
      _
    $region3: #{pfedmoe_gate_forward.1} parent=1 // pred_check_branch
      %14 = sbr.rel (0) target = $region5
    $region4: #{pfedmoe_gate_forward.1} parent=1 // pred_region
      _
    $region5: #{pfedmoe_gate_forward.1} parent=1 // pred_fallthru
      _
    // Predicated region
    $region6: #{pfedmoe_gate_forward.1} parent=1 // pred_check
      _
    $region7: #{pfedmoe_gate_forward.1} parent=1 // pred_check_branch
      %16 = sbr.rel (0) target = $region9
    $region8: #{pfedmoe_gate_forward.1} parent=1 // pred_region
      %18 = vsyncadd [#allocation3], 0
      %s19 = sshll.u32 %s1, 4
      %s20 = int_to_ptr.hbm [resolvable:$true] %s19
      %s21 = sshll.u32 [#allocation2], 4
      %s22 = int_to_ptr.vmem [resolvable:$true] %s21
      %27 = dma.hbm_to_vmem [thread:$0]  %s20, 49152, %s22, [#allocation3], 128, 128, 8
    $region9: #{pfedmoe_gate_forward.1} parent=1 // pred_fallthru
      _
    // Predicated region
    $region10: #{pfedmoe_gate_forward.1} parent=1 // pred_check
      _
    $region11: #{pfedmoe_gate_forward.1} parent=1 // pred_check_branch
      %29 = sbr.rel (0) target = $region13
    $region12: #{pfedmoe_gate_forward.1} parent=1 // pred_region
      %31 = vsyncadd [#allocation6], 0
      %s33 = sshll.u32 %s2, 4
      %s34 = int_to_ptr.hbm [resolvable:$true] %s33
      %s35 = sshll.u32 [#allocation5], 4
      %s36 = int_to_ptr.vmem [resolvable:$true] %s35
      %38 = dma.hbm_to_vmem [thread:$0]  %s34, 16, %s36, [#allocation6]
    $region13: #{pfedmoe_gate_forward.1} parent=1 // pred_fallthru
      _
    // Predicated region
    $region14: #{pfedmoe_gate_forward.1} parent=1 // pred_check
      _
    $region15: #{pfedmoe_gate_forward.1} parent=1 // pred_check_branch
      %40 = sbr.rel (0) target = $region17
    $region16: #{pfedmoe_gate_forward.1} parent=1 // pred_region
      _
    $region17: #{pfedmoe_gate_forward.1} parent=1 // pred_fallthru
      _
    // Predicated region
    $region18: #{pfedmoe_gate_forward.1} parent=1 // pred_check
      _
    $region19: #{pfedmoe_gate_forward.1} parent=1 // pred_check_branch
      %42 = sbr.rel (0) target = $region21
    $region20: #{pfedmoe_gate_forward.1} parent=1 // pred_region
      %44 = vsyncadd [#allocation6], 0
      %s46 = sshll.u32 %s4, 4
      %s47 = int_to_ptr.hbm [resolvable:$true] %s46
      %s48 = sshll.u32 [#allocation7], 4
      %s49 = int_to_ptr.vmem [resolvable:$true] %s48
      %51 = dma.hbm_to_vmem [thread:$0]  %s47, 16, %s49, [#allocation6]
    $region21: #{pfedmoe_gate_forward.1} parent=1 // pred_fallthru
      _
    // Predicated region
    $region22: #{pfedmoe_gate_forward.1} parent=1 // pred_check
      _
    $region23: #{pfedmoe_gate_forward.1} parent=1 // pred_check_branch
      %53 = sbr.rel (0) target = $region25
    $region24: #{pfedmoe_gate_forward.1} parent=1 // pred_region
      %55 = dma.done [#allocation3], 49152
    $region25: #{pfedmoe_gate_forward.1} parent=1 // pred_fallthru
      _
    // Predicated region
    $region26: #{pfedmoe_gate_forward.1} parent=1 // pred_check
      _
    $region27: #{pfedmoe_gate_forward.1} parent=1 // pred_check_branch
      %57 = sbr.rel (0) target = $region29
    $region28: #{pfedmoe_gate_forward.1} parent=1 // pred_region
      %59 = dma.done [#allocation6], 16
    $region29: #{pfedmoe_gate_forward.1} parent=1 // pred_fallthru
      _
    // Predicated region
    $region30: #{pfedmoe_gate_forward.1} parent=1 // pred_check
      _
    $region31: #{pfedmoe_gate_forward.1} parent=1 // pred_check_branch
      %61 = sbr.rel (0) target = $region33
    $region32: #{pfedmoe_gate_forward.1} parent=1 // pred_region
      %63 = dma.done [#allocation6], 16
    $region33: #{pfedmoe_gate_forward.1} parent=1 // pred_fallthru
      _
    %v64 = vld [vmem:[%s0] sm:$0xff]
    %v65 = vld [vmem:[%s0 + $0x8] sm:$0xff]
    %v66 = vld [vmem:[%s0 + $0x10] sm:$0xff]
    %v67 = vld [vmem:[%s0 + $0x18] sm:$0xff]
    %v68 = vld [vmem:[%s0 + $0x20] sm:$0xff]
    %v69 = vld [vmem:[%s0 + $0x28] sm:$0xff]
    %76 = vst [vmem:[#allocation1] ss:$4 sm:$0xff] %v64
    %s77 = scalar_lea.vmem [#allocation1], 32
    %78 = vst [vmem:[%s77] ss:$4 sm:$0xff] %v65
    %v79 = vld.sshfl [vmem:[#allocation1] sm:$0xff pattern:$0x73625140]
    %v80 = vld.sshfl [vmem:[#allocation1 + $0x8] sm:$0xff pattern:$0x73625140]
    %v81 = vld.sshfl [vmem:[#allocation1 + $0x10] sm:$0xff pattern:$0x73625140]
    %v82 = vld.sshfl [vmem:[#allocation1 + $0x18] sm:$0xff pattern:$0x73625140]
    %v83 = vld.sshfl [vmem:[#allocation1 + $0x20] sm:$0xff pattern:$0x73625140]
    %v84 = vld.sshfl [vmem:[#allocation1 + $0x28] sm:$0xff pattern:$0x73625140]
    %v85 = vld.sshfl [vmem:[#allocation1 + $0x30] sm:$0xff pattern:$0x73625140]
    %v86 = vld.sshfl [vmem:[#allocation1 + $0x38] sm:$0xff pattern:$0x73625140]
    %87 = vst [vmem:[#allocation1] ss:$4 sm:$0xff] %v66
    %88 = vst [vmem:[%s77] ss:$4 sm:$0xff] %v67
    %v89 = vld.sshfl [vmem:[#allocation1] sm:$0xff pattern:$0x73625140]
    %v90 = vld.sshfl [vmem:[#allocation1 + $0x8] sm:$0xff pattern:$0x73625140]
    %v91 = vld.sshfl [vmem:[#allocation1 + $0x10] sm:$0xff pattern:$0x73625140]
    %v92 = vld.sshfl [vmem:[#allocation1 + $0x18] sm:$0xff pattern:$0x73625140]
    %v93 = vld.sshfl [vmem:[#allocation1 + $0x20] sm:$0xff pattern:$0x73625140]
    %v94 = vld.sshfl [vmem:[#allocation1 + $0x28] sm:$0xff pattern:$0x73625140]
    %v95 = vld.sshfl [vmem:[#allocation1 + $0x30] sm:$0xff pattern:$0x73625140]
    %v96 = vld.sshfl [vmem:[#allocation1 + $0x38] sm:$0xff pattern:$0x73625140]
    %97 = vst [vmem:[#allocation1] ss:$4 sm:$0xff] %v68
    %98 = vst [vmem:[%s77] ss:$4 sm:$0xff] %v69
    %v99 = vld.sshfl [vmem:[#allocation1] sm:$0xff pattern:$0x73625140]
    %v100 = vld.sshfl [vmem:[#allocation1 + $0x8] sm:$0xff pattern:$0x73625140]
    %v101 = vld.sshfl [vmem:[#allocation1 + $0x10] sm:$0xff pattern:$0x73625140]
    %v102 = vld.sshfl [vmem:[#allocation1 + $0x18] sm:$0xff pattern:$0x73625140]
    %v103 = vld.sshfl [vmem:[#allocation1 + $0x20] sm:$0xff pattern:$0x73625140]
    %v104 = vld.sshfl [vmem:[#allocation1 + $0x28] sm:$0xff pattern:$0x73625140]
    %v105 = vld.sshfl [vmem:[#allocation1 + $0x30] sm:$0xff pattern:$0x73625140]
    %v106 = vld.sshfl [vmem:[#allocation1 + $0x38] sm:$0xff pattern:$0x73625140]
    %vm131 = vcmask 1041408
    %v132 = vsel %vm131, %v79, 0.0
    %v133 = vsel %vm131, %v80, 0.0
    %v134 = vadd.f32 %v132, %v133
    %v135 = vsel %vm131, %v81, 0.0
    %v136 = vadd.f32 %v134, %v135
    %v137 = vsel %vm131, %v82, 0.0
    %v138 = vadd.f32 %v136, %v137
    %v139 = vsel %vm131, %v83, 0.0
    %v140 = vadd.f32 %v138, %v139
    %v141 = vsel %vm131, %v84, 0.0
    %v142 = vadd.f32 %v140, %v141
    %v143 = vsel %vm131, %v85, 0.0
    %v144 = vadd.f32 %v142, %v143
    %v145 = vsel %vm131, %v86, 0.0
    %v146 = vadd.f32 %v144, %v145
    %v147 = vsel %vm131, %v89, 0.0
    %v148 = vadd.f32 %v146, %v147
    %v149 = vsel %vm131, %v90, 0.0
    %v150 = vadd.f32 %v148, %v149
    %v151 = vsel %vm131, %v91, 0.0
    %v152 = vadd.f32 %v150, %v151
    %v153 = vsel %vm131, %v92, 0.0
    %v154 = vadd.f32 %v152, %v153
    %v155 = vsel %vm131, %v93, 0.0
    %v156 = vadd.f32 %v154, %v155
    %v157 = vsel %vm131, %v94, 0.0
    %v158 = vadd.f32 %v156, %v157
    %v159 = vsel %vm131, %v95, 0.0
    %v160 = vadd.f32 %v158, %v159
    %v161 = vsel %vm131, %v96, 0.0
    %v162 = vadd.f32 %v160, %v161
    %v163 = vsel %vm131, %v99, 0.0
    %v164 = vadd.f32 %v162, %v163
    %v165 = vsel %vm131, %v100, 0.0
    %v166 = vadd.f32 %v164, %v165
    %v167 = vsel %vm131, %v101, 0.0
    %v168 = vadd.f32 %v166, %v167
    %v169 = vsel %vm131, %v102, 0.0
    %v170 = vadd.f32 %v168, %v169
    %v171 = vsel %vm131, %v103, 0.0
    %v172 = vadd.f32 %v170, %v171
    %v173 = vsel %vm131, %v104, 0.0
    %v174 = vadd.f32 %v172, %v173
    %v175 = vsel %vm131, %v105, 0.0
    %v176 = vadd.f32 %v174, %v175
    %v177 = vsel %vm131, %v106, 0.0
    %v178 = vadd.f32 %v176, %v177
    %179 = vadd.xlane.f32.xlu0 %v178
    %v180 = vpop.xlane.xlu0 %179
    %v181 = vrcp.pop 3072.0
    %v182 = vmul.f32 3072.0, %v181
    %v183 = vsub.f32 1.0, %v182
    %v184 = vmul.f32 %v181, %v183
    %v185 = vadd.f32 %v181, %v184
    %vm186 = vweird.f32 %v181
    %v187 = vsel %vm186, %v181, %v185
    %v188 = vmul.f32 %v180, %v187
    %v191 = vunpack.c.l.s4 269488144
    %v192 = vunpack.c.0.s8 %v191
    %v193 = vperm.slane %v188, %v192
    %v195 = vsub.f32 %v64, %v193
    %v196 = vsub.f32 %v65, %v193
    %v197 = vsub.f32 %v66, %v193
    %v198 = vsub.f32 %v67, %v193
    %v199 = vsub.f32 %v68, %v193
    %v200 = vsub.f32 %v69, %v193
    %v201 = vmul.f32 %v195, %v195
    %v202 = vmul.f32 %v196, %v196
    %v203 = vmul.f32 %v197, %v197
    %v204 = vmul.f32 %v198, %v198
    %v205 = vmul.f32 %v199, %v199
    %v206 = vmul.f32 %v200, %v200
    %213 = vst [vmem:[#allocation1] ss:$4 sm:$0xff] %v201
    %s214 = scalar_lea.vmem [#allocation1], 32
    %215 = vst [vmem:[%s214] ss:$4 sm:$0xff] %v202
    %v216 = vld.sshfl [vmem:[#allocation1] sm:$0xff pattern:$0x73625140]
    %v217 = vld.sshfl [vmem:[#allocation1 + $0x8] sm:$0xff pattern:$0x73625140]
    %v218 = vld.sshfl [vmem:[#allocation1 + $0x10] sm:$0xff pattern:$0x73625140]
    %v219 = vld.sshfl [vmem:[#allocation1 + $0x18] sm:$0xff pattern:$0x73625140]
    %v220 = vld.sshfl [vmem:[#allocation1 + $0x20] sm:$0xff pattern:$0x73625140]
    %v221 = vld.sshfl [vmem:[#allocation1 + $0x28] sm:$0xff pattern:$0x73625140]
    %v222 = vld.sshfl [vmem:[#allocation1 + $0x30] sm:$0xff pattern:$0x73625140]
    %v223 = vld.sshfl [vmem:[#allocation1 + $0x38] sm:$0xff pattern:$0x73625140]
    %224 = vst [vmem:[#allocation1] ss:$4 sm:$0xff] %v203
    %225 = vst [vmem:[%s214] ss:$4 sm:$0xff] %v204
    %v226 = vld.sshfl [vmem:[#allocation1] sm:$0xff pattern:$0x73625140]
    %v227 = vld.sshfl [vmem:[#allocation1 + $0x8] sm:$0xff pattern:$0x73625140]
    %v228 = vld.sshfl [vmem:[#allocation1 + $0x10] sm:$0xff pattern:$0x73625140]
    %v229 = vld.sshfl [vmem:[#allocation1 + $0x18] sm:$0xff pattern:$0x73625140]
    %v230 = vld.sshfl [vmem:[#allocation1 + $0x20] sm:$0xff pattern:$0x73625140]
    %v231 = vld.sshfl [vmem:[#allocation1 + $0x28] sm:$0xff pattern:$0x73625140]
    %v232 = vld.sshfl [vmem:[#allocation1 + $0x30] sm:$0xff pattern:$0x73625140]
    %v233 = vld.sshfl [vmem:[#allocation1 + $0x38] sm:$0xff pattern:$0x73625140]
    %234 = vst [vmem:[#allocation1] ss:$4 sm:$0xff] %v205
    %235 = vst [vmem:[%s214] ss:$4 sm:$0xff] %v206
    %v236 = vld.sshfl [vmem:[#allocation1] sm:$0xff pattern:$0x73625140]
    %v237 = vld.sshfl [vmem:[#allocation1 + $0x8] sm:$0xff pattern:$0x73625140]
    %v238 = vld.sshfl [vmem:[#allocation1 + $0x10] sm:$0xff pattern:$0x73625140]
    %v239 = vld.sshfl [vmem:[#allocation1 + $0x18] sm:$0xff pattern:$0x73625140]
    %v240 = vld.sshfl [vmem:[#allocation1 + $0x20] sm:$0xff pattern:$0x73625140]
    %v241 = vld.sshfl [vmem:[#allocation1 + $0x28] sm:$0xff pattern:$0x73625140]
    %v242 = vld.sshfl [vmem:[#allocation1 + $0x30] sm:$0xff pattern:$0x73625140]
    %v243 = vld.sshfl [vmem:[#allocation1 + $0x38] sm:$0xff pattern:$0x73625140]
    %v268 = vsel %vm131, %v216, 0.0
    %v269 = vsel %vm131, %v217, 0.0
    %v270 = vadd.f32 %v268, %v269
    %v271 = vsel %vm131, %v218, 0.0
    %v272 = vadd.f32 %v270, %v271
    %v273 = vsel %vm131, %v219, 0.0
    %v274 = vadd.f32 %v272, %v273
    %v275 = vsel %vm131, %v220, 0.0
    %v276 = vadd.f32 %v274, %v275
    %v277 = vsel %vm131, %v221, 0.0
    %v278 = vadd.f32 %v276, %v277
    %v279 = vsel %vm131, %v222, 0.0
    %v280 = vadd.f32 %v278, %v279
    %v281 = vsel %vm131, %v223, 0.0
    %v282 = vadd.f32 %v280, %v281
    %v283 = vsel %vm131, %v226, 0.0
    %v284 = vadd.f32 %v282, %v283
    %v285 = vsel %vm131, %v227, 0.0
    %v286 = vadd.f32 %v284, %v285
    %v287 = vsel %vm131, %v228, 0.0
    %v288 = vadd.f32 %v286, %v287
    %v289 = vsel %vm131, %v229, 0.0
    %v290 = vadd.f32 %v288, %v289
    %v291 = vsel %vm131, %v230, 0.0
    %v292 = vadd.f32 %v290, %v291
    %v293 = vsel %vm131, %v231, 0.0
    %v294 = vadd.f32 %v292, %v293
    %v295 = vsel %vm131, %v232, 0.0
    %v296 = vadd.f32 %v294, %v295
    %v297 = vsel %vm131, %v233, 0.0
    %v298 = vadd.f32 %v296, %v297
    %v299 = vsel %vm131, %v236, 0.0
    %v300 = vadd.f32 %v298, %v299
    %v301 = vsel %vm131, %v237, 0.0
    %v302 = vadd.f32 %v300, %v301
    %v303 = vsel %vm131, %v238, 0.0
    %v304 = vadd.f32 %v302, %v303
    %v305 = vsel %vm131, %v239, 0.0
    %v306 = vadd.f32 %v304, %v305
    %v307 = vsel %vm131, %v240, 0.0
    %v308 = vadd.f32 %v306, %v307
    %v309 = vsel %vm131, %v241, 0.0
    %v310 = vadd.f32 %v308, %v309
    %v311 = vsel %vm131, %v242, 0.0
    %v312 = vadd.f32 %v310, %v311
    %v313 = vsel %vm131, %v243, 0.0
    %v314 = vadd.f32 %v312, %v313
    %315 = vadd.xlane.f32.xlu0 %v314
    %v316 = vpop.xlane.xlu0 %315
    %v317 = vmul.f32 %v316, %v187
    %v318 = vadd.f32 %v317, 1e-05
    %v319 = vrsqrt.pop %v318
    %v320 = vmul.f32 %v319, %v318
    %v321 = vmul.f32 %v320, %v319
    %v322 = vmul.f32 0.5, %v321
    %v323 = vsub.f32 1.5, %v322
    %v324 = vmul.f32 %v319, %v323
    %vm325 = vweird.f32 %v318
    %vm326 = vweird.f32 %v319
    %vm327 = vmor %vm325, %vm326
    %v328 = vsel %vm327, %v319, %v324
    %v331 = vunpack.c.l.s4 269488144
    %v332 = vunpack.c.0.s8 %v331
    %v333 = vperm.slane %v328, %v332
    %v335 = vmul.f32 %v195, %v333
    %v336 = vmul.f32 %v196, %v333
    %v337 = vmul.f32 %v197, %v333
    %v338 = vmul.f32 %v198, %v333
    %v339 = vmul.f32 %v199, %v333
    %v340 = vmul.f32 %v200, %v333
    %v341 = vld [vmem:[#allocation2] sm:$0xff]
    %v342 = vld [vmem:[#allocation2 + $0x8] sm:$0xff]
    %v343 = vld [vmem:[#allocation2 + $0x10] sm:$0xff]
    %v344 = vld [vmem:[#allocation2 + $0x18] sm:$0xff]
    %v345 = vld [vmem:[#allocation2 + $0x20] sm:$0xff]
    %v346 = vld [vmem:[#allocation2 + $0x28] sm:$0xff]
    %v347 = vld [vmem:[#allocation2 + $0x30] sm:$0xff]
    %v348 = vld [vmem:[#allocation2 + $0x38] sm:$0xff]
    %v349 = vld [vmem:[#allocation2 + $0x40] sm:$0xff]
    %v350 = vld [vmem:[#allocation2 + $0x48] sm:$0xff]
    %v351 = vld [vmem:[#allocation2 + $0x50] sm:$0xff]
    %v352 = vld [vmem:[#allocation2 + $0x58] sm:$0xff]
    %v353 = vld [vmem:[#allocation2 + $0x60] sm:$0xff]
    %v354 = vld [vmem:[#allocation2 + $0x68] sm:$0xff]
    %v355 = vld [vmem:[#allocation2 + $0x70] sm:$0xff]
    %v356 = vld [vmem:[#allocation2 + $0x78] sm:$0xff]
    %v357 = vld [vmem:[#allocation2 + $0x80] sm:$0xff]
    %v358 = vld [vmem:[#allocation2 + $0x88] sm:$0xff]
    %v359 = vld [vmem:[#allocation2 + $0x90] sm:$0xff]
    %v360 = vld [vmem:[#allocation2 + $0x98] sm:$0xff]
    %v361 = vld [vmem:[#allocation2 + $0xa0] sm:$0xff]
    %v362 = vld [vmem:[#allocation2 + $0xa8] sm:$0xff]
    %v363 = vld [vmem:[#allocation2 + $0xb0] sm:$0xff]
    %v364 = vld [vmem:[#allocation2 + $0xb8] sm:$0xff]
    %v365 = vld [vmem:[#allocation2 + $0xc0] sm:$0xff]
    %v366 = vld [vmem:[#allocation2 + $0xc8] sm:$0xff]
    %v367 = vld [vmem:[#allocation2 + $0xd0] sm:$0xff]
    %v368 = vld [vmem:[#allocation2 + $0xd8] sm:$0xff]
    %v369 = vld [vmem:[#allocation2 + $0xe0] sm:$0xff]
    %v370 = vld [vmem:[#allocation2 + $0xe8] sm:$0xff]
    %v371 = vld [vmem:[#allocation2 + $0xf0] sm:$0xff]
    %v372 = vld [vmem:[#allocation2 + $0xf8] sm:$0xff]
    %v373 = vld [vmem:[#allocation2 + $0x100] sm:$0xff]
    %v374 = vld [vmem:[#allocation2 + $0x108] sm:$0xff]
    %v375 = vld [vmem:[#allocation2 + $0x110] sm:$0xff]
    %v376 = vld [vmem:[#allocation2 + $0x118] sm:$0xff]
    %v377 = vld [vmem:[#allocation2 + $0x120] sm:$0xff]
    %v378 = vld [vmem:[#allocation2 + $0x128] sm:$0xff]
    %v379 = vld [vmem:[#allocation2 + $0x130] sm:$0xff]
    %v380 = vld [vmem:[#allocation2 + $0x138] sm:$0xff]
    %v381 = vld [vmem:[#allocation2 + $0x140] sm:$0xff]
    %v382 = vld [vmem:[#allocation2 + $0x148] sm:$0xff]
    %v383 = vld [vmem:[#allocation2 + $0x150] sm:$0xff]
    %v384 = vld [vmem:[#allocation2 + $0x158] sm:$0xff]
    %v385 = vld [vmem:[#allocation2 + $0x160] sm:$0xff]
    %v386 = vld [vmem:[#allocation2 + $0x168] sm:$0xff]
    %v387 = vld [vmem:[#allocation2 + $0x170] sm:$0xff]
    %v388 = vld [vmem:[#allocation2 + $0x178] sm:$0xff]
    %v389 = vld [vmem:[#allocation2 + $0x180] sm:$0xff]
    %v390 = vld [vmem:[#allocation2 + $0x188] sm:$0xff]
    %v391 = vld [vmem:[#allocation2 + $0x190] sm:$0xff]
    %v392 = vld [vmem:[#allocation2 + $0x198] sm:$0xff]
    %v393 = vld [vmem:[#allocation2 + $0x1a0] sm:$0xff]
    %v394 = vld [vmem:[#allocation2 + $0x1a8] sm:$0xff]
    %v395 = vld [vmem:[#allocation2 + $0x1b0] sm:$0xff]
    %v396 = vld [vmem:[#allocation2 + $0x1b8] sm:$0xff]
    %v397 = vld [vmem:[#allocation2 + $0x1c0] sm:$0xff]
    %v398 = vld [vmem:[#allocation2 + $0x1c8] sm:$0xff]
    %v399 = vld [vmem:[#allocation2 + $0x1d0] sm:$0xff]
    %v400 = vld [vmem:[#allocation2 + $0x1d8] sm:$0xff]
    %v401 = vld [vmem:[#allocation2 + $0x1e0] sm:$0xff]
    %v402 = vld [vmem:[#allocation2 + $0x1e8] sm:$0xff]
    %v403 = vld [vmem:[#allocation2 + $0x1f0] sm:$0xff]
    %v404 = vld [vmem:[#allocation2 + $0x1f8] sm:$0xff]
    %v405 = vld [vmem:[#allocation2 + $0x200] sm:$0xff]
    %v406 = vld [vmem:[#allocation2 + $0x208] sm:$0xff]
    %v407 = vld [vmem:[#allocation2 + $0x210] sm:$0xff]
    %v408 = vld [vmem:[#allocation2 + $0x218] sm:$0xff]
    %v409 = vld [vmem:[#allocation2 + $0x220] sm:$0xff]
    %v410 = vld [vmem:[#allocation2 + $0x228] sm:$0xff]
    %v411 = vld [vmem:[#allocation2 + $0x230] sm:$0xff]
    %v412 = vld [vmem:[#allocation2 + $0x238] sm:$0xff]
    %v413 = vld [vmem:[#allocation2 + $0x240] sm:$0xff]
    %v414 = vld [vmem:[#allocation2 + $0x248] sm:$0xff]
    %v415 = vld [vmem:[#allocation2 + $0x250] sm:$0xff]
    %v416 = vld [vmem:[#allocation2 + $0x258] sm:$0xff]
    %v417 = vld [vmem:[#allocation2 + $0x260] sm:$0xff]
    %v418 = vld [vmem:[#allocation2 + $0x268] sm:$0xff]
    %v419 = vld [vmem:[#allocation2 + $0x270] sm:$0xff]
    %v420 = vld [vmem:[#allocation2 + $0x278] sm:$0xff]
    %v421 = vld [vmem:[#allocation2 + $0x280] sm:$0xff]
    %v422 = vld [vmem:[#allocation2 + $0x288] sm:$0xff]
    %v423 = vld [vmem:[#allocation2 + $0x290] sm:$0xff]
    %v424 = vld [vmem:[#allocation2 + $0x298] sm:$0xff]
    %v425 = vld [vmem:[#allocation2 + $0x2a0] sm:$0xff]
    %v426 = vld [vmem:[#allocation2 + $0x2a8] sm:$0xff]
    %v427 = vld [vmem:[#allocation2 + $0x2b0] sm:$0xff]
    %v428 = vld [vmem:[#allocation2 + $0x2b8] sm:$0xff]
    %v429 = vld [vmem:[#allocation2 + $0x2c0] sm:$0xff]
    %v430 = vld [vmem:[#allocation2 + $0x2c8] sm:$0xff]
    %v431 = vld [vmem:[#allocation2 + $0x2d0] sm:$0xff]
    %v432 = vld [vmem:[#allocation2 + $0x2d8] sm:$0xff]
    %v433 = vld [vmem:[#allocation2 + $0x2e0] sm:$0xff]
    %v434 = vld [vmem:[#allocation2 + $0x2e8] sm:$0xff]
    %v435 = vld [vmem:[#allocation2 + $0x2f0] sm:$0xff]
    %v436 = vld [vmem:[#allocation2 + $0x2f8] sm:$0xff]
    %v437 = vld [vmem:[#allocation2 + $0x300] sm:$0xff]
    %v438 = vld [vmem:[#allocation2 + $0x308] sm:$0xff]
    %v439 = vld [vmem:[#allocation2 + $0x310] sm:$0xff]
    %v440 = vld [vmem:[#allocation2 + $0x318] sm:$0xff]
    %v441 = vld [vmem:[#allocation2 + $0x320] sm:$0xff]
    %v442 = vld [vmem:[#allocation2 + $0x328] sm:$0xff]
    %v443 = vld [vmem:[#allocation2 + $0x330] sm:$0xff]
    %v444 = vld [vmem:[#allocation2 + $0x338] sm:$0xff]
    %v445 = vld [vmem:[#allocation2 + $0x340] sm:$0xff]
    %v446 = vld [vmem:[#allocation2 + $0x348] sm:$0xff]
    %v447 = vld [vmem:[#allocation2 + $0x350] sm:$0xff]
    %v448 = vld [vmem:[#allocation2 + $0x358] sm:$0xff]
    %v449 = vld [vmem:[#allocation2 + $0x360] sm:$0xff]
    %v450 = vld [vmem:[#allocation2 + $0x368] sm:$0xff]
    %v451 = vld [vmem:[#allocation2 + $0x370] sm:$0xff]
    %v452 = vld [vmem:[#allocation2 + $0x378] sm:$0xff]
    %v453 = vld [vmem:[#allocation2 + $0x380] sm:$0xff]
    %v454 = vld [vmem:[#allocation2 + $0x388] sm:$0xff]
    %v455 = vld [vmem:[#allocation2 + $0x390] sm:$0xff]
    %v456 = vld [vmem:[#allocation2 + $0x398] sm:$0xff]
    %v457 = vld [vmem:[#allocation2 + $0x3a0] sm:$0xff]
    %v458 = vld [vmem:[#allocation2 + $0x3a8] sm:$0xff]
    %v459 = vld [vmem:[#allocation2 + $0x3b0] sm:$0xff]
    %v460 = vld [vmem:[#allocation2 + $0x3b8] sm:$0xff]
    %v461 = vld [vmem:[#allocation2 + $0x3c0] sm:$0xff]
    %v462 = vld [vmem:[#allocation2 + $0x3c8] sm:$0xff]
    %v463 = vld [vmem:[#allocation2 + $0x3d0] sm:$0xff]
    %v464 = vld [vmem:[#allocation2 + $0x3d8] sm:$0xff]
    %v465 = vld [vmem:[#allocation2 + $0x3e0] sm:$0xff]
    %v466 = vld [vmem:[#allocation2 + $0x3e8] sm:$0xff]
    %v467 = vld [vmem:[#allocation2 + $0x3f0] sm:$0xff]
    %v468 = vld [vmem:[#allocation2 + $0x3f8] sm:$0xff]
    %v469 = vld [vmem:[#allocation2 + $0x400] sm:$0xff]
    %v470 = vld [vmem:[#allocation2 + $0x408] sm:$0xff]
    %v471 = vld [vmem:[#allocation2 + $0x410] sm:$0xff]
    %v472 = vld [vmem:[#allocation2 + $0x418] sm:$0xff]
    %v473 = vld [vmem:[#allocation2 + $0x420] sm:$0xff]
    %v474 = vld [vmem:[#allocation2 + $0x428] sm:$0xff]
    %v475 = vld [vmem:[#allocation2 + $0x430] sm:$0xff]
    %v476 = vld [vmem:[#allocation2 + $0x438] sm:$0xff]
    %v477 = vld [vmem:[#allocation2 + $0x440] sm:$0xff]
    %v478 = vld [vmem:[#allocation2 + $0x448] sm:$0xff]
    %v479 = vld [vmem:[#allocation2 + $0x450] sm:$0xff]
    %v480 = vld [vmem:[#allocation2 + $0x458] sm:$0xff]
    %v481 = vld [vmem:[#allocation2 + $0x460] sm:$0xff]
    %v482 = vld [vmem:[#allocation2 + $0x468] sm:$0xff]
    %v483 = vld [vmem:[#allocation2 + $0x470] sm:$0xff]
    %v484 = vld [vmem:[#allocation2 + $0x478] sm:$0xff]
    %v485 = vld [vmem:[#allocation2 + $0x480] sm:$0xff]
    %v486 = vld [vmem:[#allocation2 + $0x488] sm:$0xff]
    %v487 = vld [vmem:[#allocation2 + $0x490] sm:$0xff]
    %v488 = vld [vmem:[#allocation2 + $0x498] sm:$0xff]
    %v489 = vld [vmem:[#allocation2 + $0x4a0] sm:$0xff]
    %v490 = vld [vmem:[#allocation2 + $0x4a8] sm:$0xff]
    %v491 = vld [vmem:[#allocation2 + $0x4b0] sm:$0xff]
    %v492 = vld [vmem:[#allocation2 + $0x4b8] sm:$0xff]
    %v493 = vld [vmem:[#allocation2 + $0x4c0] sm:$0xff]
    %v494 = vld [vmem:[#allocation2 + $0x4c8] sm:$0xff]
    %v495 = vld [vmem:[#allocation2 + $0x4d0] sm:$0xff]
    %v496 = vld [vmem:[#allocation2 + $0x4d8] sm:$0xff]
    %v497 = vld [vmem:[#allocation2 + $0x4e0] sm:$0xff]
    %v498 = vld [vmem:[#allocation2 + $0x4e8] sm:$0xff]
    %v499 = vld [vmem:[#allocation2 + $0x4f0] sm:$0xff]
    %v500 = vld [vmem:[#allocation2 + $0x4f8] sm:$0xff]
    %v501 = vld [vmem:[#allocation2 + $0x500] sm:$0xff]
    %v502 = vld [vmem:[#allocation2 + $0x508] sm:$0xff]
    %v503 = vld [vmem:[#allocation2 + $0x510] sm:$0xff]
    %v504 = vld [vmem:[#allocation2 + $0x518] sm:$0xff]
    %v505 = vld [vmem:[#allocation2 + $0x520] sm:$0xff]
    %v506 = vld [vmem:[#allocation2 + $0x528] sm:$0xff]
    %v507 = vld [vmem:[#allocation2 + $0x530] sm:$0xff]
    %v508 = vld [vmem:[#allocation2 + $0x538] sm:$0xff]
    %v509 = vld [vmem:[#allocation2 + $0x540] sm:$0xff]
    %v510 = vld [vmem:[#allocation2 + $0x548] sm:$0xff]
    %v511 = vld [vmem:[#allocation2 + $0x550] sm:$0xff]
    %v512 = vld [vmem:[#allocation2 + $0x558] sm:$0xff]
    %v513 = vld [vmem:[#allocation2 + $0x560] sm:$0xff]
    %v514 = vld [vmem:[#allocation2 + $0x568] sm:$0xff]
    %v515 = vld [vmem:[#allocation2 + $0x570] sm:$0xff]
    %v516 = vld [vmem:[#allocation2 + $0x578] sm:$0xff]
    %v517 = vld [vmem:[#allocation2 + $0x580] sm:$0xff]
    %v518 = vld [vmem:[#allocation2 + $0x588] sm:$0xff]
    %v519 = vld [vmem:[#allocation2 + $0x590] sm:$0xff]
    %v520 = vld [vmem:[#allocation2 + $0x598] sm:$0xff]
    %v521 = vld [vmem:[#allocation2 + $0x5a0] sm:$0xff]
    %v522 = vld [vmem:[#allocation2 + $0x5a8] sm:$0xff]
    %v523 = vld [vmem:[#allocation2 + $0x5b0] sm:$0xff]
    %v524 = vld [vmem:[#allocation2 + $0x5b8] sm:$0xff]
    %v525 = vld [vmem:[#allocation2 + $0x5c0] sm:$0xff]
    %v526 = vld [vmem:[#allocation2 + $0x5c8] sm:$0xff]
    %v527 = vld [vmem:[#allocation2 + $0x5d0] sm:$0xff]
    %v528 = vld [vmem:[#allocation2 + $0x5d8] sm:$0xff]
    %v529 = vld [vmem:[#allocation2 + $0x5e0] sm:$0xff]
    %v530 = vld [vmem:[#allocation2 + $0x5e8] sm:$0xff]
    %v531 = vld [vmem:[#allocation2 + $0x5f0] sm:$0xff]
    %v532 = vld [vmem:[#allocation2 + $0x5f8] sm:$0xff]
    %v533 = vld [vmem:[#allocation2 + $0x600] sm:$0xff]
    %v534 = vld [vmem:[#allocation2 + $0x608] sm:$0xff]
    %v535 = vld [vmem:[#allocation2 + $0x610] sm:$0xff]
    %v536 = vld [vmem:[#allocation2 + $0x618] sm:$0xff]
    %v537 = vld [vmem:[#allocation2 + $0x620] sm:$0xff]
    %v538 = vld [vmem:[#allocation2 + $0x628] sm:$0xff]
    %v539 = vld [vmem:[#allocation2 + $0x630] sm:$0xff]
    %v540 = vld [vmem:[#allocation2 + $0x638] sm:$0xff]
    %v541 = vld [vmem:[#allocation2 + $0x640] sm:$0xff]
    %v542 = vld [vmem:[#allocation2 + $0x648] sm:$0xff]
    %v543 = vld [vmem:[#allocation2 + $0x650] sm:$0xff]
    %v544 = vld [vmem:[#allocation2 + $0x658] sm:$0xff]
    %v545 = vld [vmem:[#allocation2 + $0x660] sm:$0xff]
    %v546 = vld [vmem:[#allocation2 + $0x668] sm:$0xff]
    %v547 = vld [vmem:[#allocation2 + $0x670] sm:$0xff]
    %v548 = vld [vmem:[#allocation2 + $0x678] sm:$0xff]
    %v549 = vld [vmem:[#allocation2 + $0x680] sm:$0xff]
    %v550 = vld [vmem:[#allocation2 + $0x688] sm:$0xff]
    %v551 = vld [vmem:[#allocation2 + $0x690] sm:$0xff]
    %v552 = vld [vmem:[#allocation2 + $0x698] sm:$0xff]
    %v553 = vld [vmem:[#allocation2 + $0x6a0] sm:$0xff]
    %v554 = vld [vmem:[#allocation2 + $0x6a8] sm:$0xff]
    %v555 = vld [vmem:[#allocation2 + $0x6b0] sm:$0xff]
    %v556 = vld [vmem:[#allocation2 + $0x6b8] sm:$0xff]
    %v557 = vld [vmem:[#allocation2 + $0x6c0] sm:$0xff]
    %v558 = vld [vmem:[#allocation2 + $0x6c8] sm:$0xff]
    %v559 = vld [vmem:[#allocation2 + $0x6d0] sm:$0xff]
    %v560 = vld [vmem:[#allocation2 + $0x6d8] sm:$0xff]
    %v561 = vld [vmem:[#allocation2 + $0x6e0] sm:$0xff]
    %v562 = vld [vmem:[#allocation2 + $0x6e8] sm:$0xff]
    %v563 = vld [vmem:[#allocation2 + $0x6f0] sm:$0xff]
    %v564 = vld [vmem:[#allocation2 + $0x6f8] sm:$0xff]
    %v565 = vld [vmem:[#allocation2 + $0x700] sm:$0xff]
    %v566 = vld [vmem:[#allocation2 + $0x708] sm:$0xff]
    %v567 = vld [vmem:[#allocation2 + $0x710] sm:$0xff]
    %v568 = vld [vmem:[#allocation2 + $0x718] sm:$0xff]
    %v569 = vld [vmem:[#allocation2 + $0x720] sm:$0xff]
    %v570 = vld [vmem:[#allocation2 + $0x728] sm:$0xff]
    %v571 = vld [vmem:[#allocation2 + $0x730] sm:$0xff]
    %v572 = vld [vmem:[#allocation2 + $0x738] sm:$0xff]
    %v573 = vld [vmem:[#allocation2 + $0x740] sm:$0xff]
    %v574 = vld [vmem:[#allocation2 + $0x748] sm:$0xff]
    %v575 = vld [vmem:[#allocation2 + $0x750] sm:$0xff]
    %v576 = vld [vmem:[#allocation2 + $0x758] sm:$0xff]
    %v577 = vld [vmem:[#allocation2 + $0x760] sm:$0xff]
    %v578 = vld [vmem:[#allocation2 + $0x768] sm:$0xff]
    %v579 = vld [vmem:[#allocation2 + $0x770] sm:$0xff]
    %v580 = vld [vmem:[#allocation2 + $0x778] sm:$0xff]
    %v581 = vld [vmem:[#allocation2 + $0x780] sm:$0xff]
    %v582 = vld [vmem:[#allocation2 + $0x788] sm:$0xff]
    %v583 = vld [vmem:[#allocation2 + $0x790] sm:$0xff]
    %v584 = vld [vmem:[#allocation2 + $0x798] sm:$0xff]
    %v585 = vld [vmem:[#allocation2 + $0x7a0] sm:$0xff]
    %v586 = vld [vmem:[#allocation2 + $0x7a8] sm:$0xff]
    %v587 = vld [vmem:[#allocation2 + $0x7b0] sm:$0xff]
    %v588 = vld [vmem:[#allocation2 + $0x7b8] sm:$0xff]
    %v589 = vld [vmem:[#allocation2 + $0x7c0] sm:$0xff]
    %v590 = vld [vmem:[#allocation2 + $0x7c8] sm:$0xff]
    %v591 = vld [vmem:[#allocation2 + $0x7d0] sm:$0xff]
    %v592 = vld [vmem:[#allocation2 + $0x7d8] sm:$0xff]
    %v593 = vld [vmem:[#allocation2 + $0x7e0] sm:$0xff]
    %v594 = vld [vmem:[#allocation2 + $0x7e8] sm:$0xff]
    %v595 = vld [vmem:[#allocation2 + $0x7f0] sm:$0xff]
    %v596 = vld [vmem:[#allocation2 + $0x7f8] sm:$0xff]
    %v597 = vld [vmem:[#allocation2 + $0x800] sm:$0xff]
    %v598 = vld [vmem:[#allocation2 + $0x808] sm:$0xff]
    %v599 = vld [vmem:[#allocation2 + $0x810] sm:$0xff]
    %v600 = vld [vmem:[#allocation2 + $0x818] sm:$0xff]
    %v601 = vld [vmem:[#allocation2 + $0x820] sm:$0xff]
    %v602 = vld [vmem:[#allocation2 + $0x828] sm:$0xff]
    %v603 = vld [vmem:[#allocation2 + $0x830] sm:$0xff]
    %v604 = vld [vmem:[#allocation2 + $0x838] sm:$0xff]
    %v605 = vld [vmem:[#allocation2 + $0x840] sm:$0xff]
    %v606 = vld [vmem:[#allocation2 + $0x848] sm:$0xff]
    %v607 = vld [vmem:[#allocation2 + $0x850] sm:$0xff]
    %v608 = vld [vmem:[#allocation2 + $0x858] sm:$0xff]
    %v609 = vld [vmem:[#allocation2 + $0x860] sm:$0xff]
    %v610 = vld [vmem:[#allocation2 + $0x868] sm:$0xff]
    %v611 = vld [vmem:[#allocation2 + $0x870] sm:$0xff]
    %v612 = vld [vmem:[#allocation2 + $0x878] sm:$0xff]
    %v613 = vld [vmem:[#allocation2 + $0x880] sm:$0xff]
    %v614 = vld [vmem:[#allocation2 + $0x888] sm:$0xff]
    %v615 = vld [vmem:[#allocation2 + $0x890] sm:$0xff]
    %v616 = vld [vmem:[#allocation2 + $0x898] sm:$0xff]
    %v617 = vld [vmem:[#allocation2 + $0x8a0] sm:$0xff]
    %v618 = vld [vmem:[#allocation2 + $0x8a8] sm:$0xff]
    %v619 = vld [vmem:[#allocation2 + $0x8b0] sm:$0xff]
    %v620 = vld [vmem:[#allocation2 + $0x8b8] sm:$0xff]
    %v621 = vld [vmem:[#allocation2 + $0x8c0] sm:$0xff]
    %v622 = vld [vmem:[#allocation2 + $0x8c8] sm:$0xff]
    %v623 = vld [vmem:[#allocation2 + $0x8d0] sm:$0xff]
    %v624 = vld [vmem:[#allocation2 + $0x8d8] sm:$0xff]
    %v625 = vld [vmem:[#allocation2 + $0x8e0] sm:$0xff]
    %v626 = vld [vmem:[#allocation2 + $0x8e8] sm:$0xff]
    %v627 = vld [vmem:[#allocation2 + $0x8f0] sm:$0xff]
    %v628 = vld [vmem:[#allocation2 + $0x8f8] sm:$0xff]
    %v629 = vld [vmem:[#allocation2 + $0x900] sm:$0xff]
    %v630 = vld [vmem:[#allocation2 + $0x908] sm:$0xff]
    %v631 = vld [vmem:[#allocation2 + $0x910] sm:$0xff]
    %v632 = vld [vmem:[#allocation2 + $0x918] sm:$0xff]
    %v633 = vld [vmem:[#allocation2 + $0x920] sm:$0xff]
    %v634 = vld [vmem:[#allocation2 + $0x928] sm:$0xff]
    %v635 = vld [vmem:[#allocation2 + $0x930] sm:$0xff]
    %v636 = vld [vmem:[#allocation2 + $0x938] sm:$0xff]
    %v637 = vld [vmem:[#allocation2 + $0x940] sm:$0xff]
    %v638 = vld [vmem:[#allocation2 + $0x948] sm:$0xff]
    %v639 = vld [vmem:[#allocation2 + $0x950] sm:$0xff]
    %v640 = vld [vmem:[#allocation2 + $0x958] sm:$0xff]
    %v641 = vld [vmem:[#allocation2 + $0x960] sm:$0xff]
    %v642 = vld [vmem:[#allocation2 + $0x968] sm:$0xff]
    %v643 = vld [vmem:[#allocation2 + $0x970] sm:$0xff]
    %v644 = vld [vmem:[#allocation2 + $0x978] sm:$0xff]
    %v645 = vld [vmem:[#allocation2 + $0x980] sm:$0xff]
    %v646 = vld [vmem:[#allocation2 + $0x988] sm:$0xff]
    %v647 = vld [vmem:[#allocation2 + $0x990] sm:$0xff]
    %v648 = vld [vmem:[#allocation2 + $0x998] sm:$0xff]
    %v649 = vld [vmem:[#allocation2 + $0x9a0] sm:$0xff]
    %v650 = vld [vmem:[#allocation2 + $0x9a8] sm:$0xff]
    %v651 = vld [vmem:[#allocation2 + $0x9b0] sm:$0xff]
    %v652 = vld [vmem:[#allocation2 + $0x9b8] sm:$0xff]
    %v653 = vld [vmem:[#allocation2 + $0x9c0] sm:$0xff]
    %v654 = vld [vmem:[#allocation2 + $0x9c8] sm:$0xff]
    %v655 = vld [vmem:[#allocation2 + $0x9d0] sm:$0xff]
    %v656 = vld [vmem:[#allocation2 + $0x9d8] sm:$0xff]
    %v657 = vld [vmem:[#allocation2 + $0x9e0] sm:$0xff]
    %v658 = vld [vmem:[#allocation2 + $0x9e8] sm:$0xff]
    %v659 = vld [vmem:[#allocation2 + $0x9f0] sm:$0xff]
    %v660 = vld [vmem:[#allocation2 + $0x9f8] sm:$0xff]
    %v661 = vld [vmem:[#allocation2 + $0xa00] sm:$0xff]
    %v662 = vld [vmem:[#allocation2 + $0xa08] sm:$0xff]
    %v663 = vld [vmem:[#allocation2 + $0xa10] sm:$0xff]
    %v664 = vld [vmem:[#allocation2 + $0xa18] sm:$0xff]
    %v665 = vld [vmem:[#allocation2 + $0xa20] sm:$0xff]
    %v666 = vld [vmem:[#allocation2 + $0xa28] sm:$0xff]
    %v667 = vld [vmem:[#allocation2 + $0xa30] sm:$0xff]
    %v668 = vld [vmem:[#allocation2 + $0xa38] sm:$0xff]
    %v669 = vld [vmem:[#allocation2 + $0xa40] sm:$0xff]
    %v670 = vld [vmem:[#allocation2 + $0xa48] sm:$0xff]
    %v671 = vld [vmem:[#allocation2 + $0xa50] sm:$0xff]
    %v672 = vld [vmem:[#allocation2 + $0xa58] sm:$0xff]
    %v673 = vld [vmem:[#allocation2 + $0xa60] sm:$0xff]
    %v674 = vld [vmem:[#allocation2 + $0xa68] sm:$0xff]
    %v675 = vld [vmem:[#allocation2 + $0xa70] sm:$0xff]
    %v676 = vld [vmem:[#allocation2 + $0xa78] sm:$0xff]
    %v677 = vld [vmem:[#allocation2 + $0xa80] sm:$0xff]
    %v678 = vld [vmem:[#allocation2 + $0xa88] sm:$0xff]
    %v679 = vld [vmem:[#allocation2 + $0xa90] sm:$0xff]
    %v680 = vld [vmem:[#allocation2 + $0xa98] sm:$0xff]
    %v681 = vld [vmem:[#allocation2 + $0xaa0] sm:$0xff]
    %v682 = vld [vmem:[#allocation2 + $0xaa8] sm:$0xff]
    %v683 = vld [vmem:[#allocation2 + $0xab0] sm:$0xff]
    %v684 = vld [vmem:[#allocation2 + $0xab8] sm:$0xff]
    %v685 = vld [vmem:[#allocation2 + $0xac0] sm:$0xff]
    %v686 = vld [vmem:[#allocation2 + $0xac8] sm:$0xff]
    %v687 = vld [vmem:[#allocation2 + $0xad0] sm:$0xff]
    %v688 = vld [vmem:[#allocation2 + $0xad8] sm:$0xff]
    %v689 = vld [vmem:[#allocation2 + $0xae0] sm:$0xff]
    %v690 = vld [vmem:[#allocation2 + $0xae8] sm:$0xff]
    %v691 = vld [vmem:[#allocation2 + $0xaf0] sm:$0xff]
    %v692 = vld [vmem:[#allocation2 + $0xaf8] sm:$0xff]
    %v693 = vld [vmem:[#allocation2 + $0xb00] sm:$0xff]
    %v694 = vld [vmem:[#allocation2 + $0xb08] sm:$0xff]
    %v695 = vld [vmem:[#allocation2 + $0xb10] sm:$0xff]
    %v696 = vld [vmem:[#allocation2 + $0xb18] sm:$0xff]
    %v697 = vld [vmem:[#allocation2 + $0xb20] sm:$0xff]
    %v698 = vld [vmem:[#allocation2 + $0xb28] sm:$0xff]
    %v699 = vld [vmem:[#allocation2 + $0xb30] sm:$0xff]
    %v700 = vld [vmem:[#allocation2 + $0xb38] sm:$0xff]
    %v701 = vld [vmem:[#allocation2 + $0xb40] sm:$0xff]
    %v702 = vld [vmem:[#allocation2 + $0xb48] sm:$0xff]
    %v703 = vld [vmem:[#allocation2 + $0xb50] sm:$0xff]
    %v704 = vld [vmem:[#allocation2 + $0xb58] sm:$0xff]
    %v705 = vld [vmem:[#allocation2 + $0xb60] sm:$0xff]
    %v706 = vld [vmem:[#allocation2 + $0xb68] sm:$0xff]
    %v707 = vld [vmem:[#allocation2 + $0xb70] sm:$0xff]
    %v708 = vld [vmem:[#allocation2 + $0xb78] sm:$0xff]
    %v709 = vld [vmem:[#allocation2 + $0xb80] sm:$0xff]
    %v710 = vld [vmem:[#allocation2 + $0xb88] sm:$0xff]
    %v711 = vld [vmem:[#allocation2 + $0xb90] sm:$0xff]
    %v712 = vld [vmem:[#allocation2 + $0xb98] sm:$0xff]
    %v713 = vld [vmem:[#allocation2 + $0xba0] sm:$0xff]
    %v714 = vld [vmem:[#allocation2 + $0xba8] sm:$0xff]
    %v715 = vld [vmem:[#allocation2 + $0xbb0] sm:$0xff]
    %v716 = vld [vmem:[#allocation2 + $0xbb8] sm:$0xff]
    %v717 = vld [vmem:[#allocation2 + $0xbc0] sm:$0xff]
    %v718 = vld [vmem:[#allocation2 + $0xbc8] sm:$0xff]
    %v719 = vld [vmem:[#allocation2 + $0xbd0] sm:$0xff]
    %v720 = vld [vmem:[#allocation2 + $0xbd8] sm:$0xff]
    %v721 = vld [vmem:[#allocation2 + $0xbe0] sm:$0xff]
    %v722 = vld [vmem:[#allocation2 + $0xbe8] sm:$0xff]
    %v723 = vld [vmem:[#allocation2 + $0xbf0] sm:$0xff]
    %v724 = vld [vmem:[#allocation2 + $0xbf8] sm:$0xff]
    %v725 = vld [vmem:[#allocation5] sm:$0x1]
    %v727 = vperm.slane %v725, 0
    %735 = vst [vmem:[#allocation1] ss:$4 sm:$0xff] %v335
    %s736 = scalar_lea.vmem [#allocation1], 32
    %737 = vst [vmem:[%s736] ss:$4 sm:$0xff] %v336
    %v738 = vld.sshfl [vmem:[#allocation1] sm:$0xff pattern:$0x73625140]
    %v739 = vld.sshfl [vmem:[#allocation1 + $0x8] sm:$0xff pattern:$0x73625140]
    %v740 = vld.sshfl [vmem:[#allocation1 + $0x10] sm:$0xff pattern:$0x73625140]
    %v741 = vld.sshfl [vmem:[#allocation1 + $0x18] sm:$0xff pattern:$0x73625140]
    %v742 = vld.sshfl [vmem:[#allocation1 + $0x20] sm:$0xff pattern:$0x73625140]
    %v743 = vld.sshfl [vmem:[#allocation1 + $0x28] sm:$0xff pattern:$0x73625140]
    %v744 = vld.sshfl [vmem:[#allocation1 + $0x30] sm:$0xff pattern:$0x73625140]
    %v745 = vld.sshfl [vmem:[#allocation1 + $0x38] sm:$0xff pattern:$0x73625140]
    %746 = vst [vmem:[#allocation1] ss:$4 sm:$0xff] %v337
    %747 = vst [vmem:[%s736] ss:$4 sm:$0xff] %v338
    %v748 = vld.sshfl [vmem:[#allocation1] sm:$0xff pattern:$0x73625140]
    %v749 = vld.sshfl [vmem:[#allocation1 + $0x8] sm:$0xff pattern:$0x73625140]
    %v750 = vld.sshfl [vmem:[#allocation1 + $0x10] sm:$0xff pattern:$0x73625140]
    %v751 = vld.sshfl [vmem:[#allocation1 + $0x18] sm:$0xff pattern:$0x73625140]
    %v752 = vld.sshfl [vmem:[#allocation1 + $0x20] sm:$0xff pattern:$0x73625140]
    %v753 = vld.sshfl [vmem:[#allocation1 + $0x28] sm:$0xff pattern:$0x73625140]
    %v754 = vld.sshfl [vmem:[#allocation1 + $0x30] sm:$0xff pattern:$0x73625140]
    %v755 = vld.sshfl [vmem:[#allocation1 + $0x38] sm:$0xff pattern:$0x73625140]
    %756 = vst [vmem:[#allocation1] ss:$4 sm:$0xff] %v339
    %757 = vst [vmem:[%s736] ss:$4 sm:$0xff] %v340
    %v758 = vld.sshfl [vmem:[#allocation1] sm:$0xff pattern:$0x73625140]
    %v759 = vld.sshfl [vmem:[#allocation1 + $0x8] sm:$0xff pattern:$0x73625140]
    %v760 = vld.sshfl [vmem:[#allocation1 + $0x10] sm:$0xff pattern:$0x73625140]
    %v761 = vld.sshfl [vmem:[#allocation1 + $0x18] sm:$0xff pattern:$0x73625140]
    %v762 = vld.sshfl [vmem:[#allocation1 + $0x20] sm:$0xff pattern:$0x73625140]
    %v763 = vld.sshfl [vmem:[#allocation1 + $0x28] sm:$0xff pattern:$0x73625140]
    %v764 = vld.sshfl [vmem:[#allocation1 + $0x30] sm:$0xff pattern:$0x73625140]
    %v765 = vld.sshfl [vmem:[#allocation1 + $0x38] sm:$0xff pattern:$0x73625140]
    %790 = vmatpush.msra.mxu0 %v356
    %791 = vmatpush.msra.mxu0 %v355
    %792 = vmatpush.msra.mxu0 %v354
    %793 = vmatpush.msra.mxu0 %v353
    %794 = vmatpush.msra.mxu0 %v352
    %795 = vmatpush.msra.mxu0 %v351
    %796 = vmatpush.msra.mxu0 %v350
    %797 = vmatpush.msra.mxu0 %v349
    %798 = vmatpush.msra.mxu0 %v348
    %799 = vmatpush.msra.mxu0 %v347
    %800 = vmatpush.msra.mxu0 %v346
    %801 = vmatpush.msra.mxu0 %v345
    %802 = vmatpush.msra.mxu0 %v344
    %803 = vmatpush.msra.mxu0 %v343
    %804 = vmatpush.msra.mxu0 %v342
    %805 = vmatpush.msra.mxu0 %v341
    %806 = vmatmul.f32.gmra.mxu0 %v738
    %v807 = vpop.f32.mrf.mxu0
    %v808 = vadd.f32 %v727, %v807
    %809 = vdwg.mxu0
    %810 = vmatpush.msra.mxu0 %v372
    %811 = vmatpush.msra.mxu0 %v371
    %812 = vmatpush.msra.mxu0 %v370
    %813 = vmatpush.msra.mxu0 %v369
    %814 = vmatpush.msra.mxu0 %v368
    %815 = vmatpush.msra.mxu0 %v367
    %816 = vmatpush.msra.mxu0 %v366
    %817 = vmatpush.msra.mxu0 %v365
    %818 = vmatpush.msra.mxu0 %v364
    %819 = vmatpush.msra.mxu0 %v363
    %820 = vmatpush.msra.mxu0 %v362
    %821 = vmatpush.msra.mxu0 %v361
    %822 = vmatpush.msra.mxu0 %v360
    %823 = vmatpush.msra.mxu0 %v359
    %824 = vmatpush.msra.mxu0 %v358
    %825 = vmatpush.msra.mxu0 %v357
    %826 = vmatmul.f32.gmra.mxu0 %v739
    %v827 = vpop.f32.mrf.mxu0
    %v828 = vadd.f32 %v808, %v827
    %829 = vdwg.mxu0
    %830 = vmatpush.msra.mxu0 %v388
    %831 = vmatpush.msra.mxu0 %v387
    %832 = vmatpush.msra.mxu0 %v386
    %833 = vmatpush.msra.mxu0 %v385
    %834 = vmatpush.msra.mxu0 %v384
    %835 = vmatpush.msra.mxu0 %v383
    %836 = vmatpush.msra.mxu0 %v382
    %837 = vmatpush.msra.mxu0 %v381
    %838 = vmatpush.msra.mxu0 %v380
    %839 = vmatpush.msra.mxu0 %v379
    %840 = vmatpush.msra.mxu0 %v378
    %841 = vmatpush.msra.mxu0 %v377
    %842 = vmatpush.msra.mxu0 %v376
    %843 = vmatpush.msra.mxu0 %v375
    %844 = vmatpush.msra.mxu0 %v374
    %845 = vmatpush.msra.mxu0 %v373
    %846 = vmatmul.f32.gmra.mxu0 %v740
    %v847 = vpop.f32.mrf.mxu0
    %v848 = vadd.f32 %v828, %v847
    %849 = vdwg.mxu0
    %850 = vmatpush.msra.mxu0 %v404
    %851 = vmatpush.msra.mxu0 %v403
    %852 = vmatpush.msra.mxu0 %v402
    %853 = vmatpush.msra.mxu0 %v401
    %854 = vmatpush.msra.mxu0 %v400
    %855 = vmatpush.msra.mxu0 %v399
    %856 = vmatpush.msra.mxu0 %v398
    %857 = vmatpush.msra.mxu0 %v397
    %858 = vmatpush.msra.mxu0 %v396
    %859 = vmatpush.msra.mxu0 %v395
    %860 = vmatpush.msra.mxu0 %v394
    %861 = vmatpush.msra.mxu0 %v393
    %862 = vmatpush.msra.mxu0 %v392
    %863 = vmatpush.msra.mxu0 %v391
    %864 = vmatpush.msra.mxu0 %v390
    %865 = vmatpush.msra.mxu0 %v389
    %866 = vmatmul.f32.gmra.mxu0 %v741
    %v867 = vpop.f32.mrf.mxu0
    %v868 = vadd.f32 %v848, %v867
    %869 = vdwg.mxu0
    %870 = vmatpush.msra.mxu0 %v420
    %871 = vmatpush.msra.mxu0 %v419
    %872 = vmatpush.msra.mxu0 %v418
    %873 = vmatpush.msra.mxu0 %v417
    %874 = vmatpush.msra.mxu0 %v416
    %875 = vmatpush.msra.mxu0 %v415
    %876 = vmatpush.msra.mxu0 %v414
    %877 = vmatpush.msra.mxu0 %v413
    %878 = vmatpush.msra.mxu0 %v412
    %879 = vmatpush.msra.mxu0 %v411
    %880 = vmatpush.msra.mxu0 %v410
    %881 = vmatpush.msra.mxu0 %v409
    %882 = vmatpush.msra.mxu0 %v408
    %883 = vmatpush.msra.mxu0 %v407
    %884 = vmatpush.msra.mxu0 %v406
    %885 = vmatpush.msra.mxu0 %v405
    %886 = vmatmul.f32.gmra.mxu0 %v742
    %v887 = vpop.f32.mrf.mxu0
    %v888 = vadd.f32 %v868, %v887
    %889 = vdwg.mxu0
    %890 = vmatpush.msra.mxu0 %v436
    %891 = vmatpush.msra.mxu0 %v435
    %892 = vmatpush.msra.mxu0 %v434
    %893 = vmatpush.msra.mxu0 %v433
    %894 = vmatpush.msra.mxu0 %v432
    %895 = vmatpush.msra.mxu0 %v431
    %896 = vmatpush.msra.mxu0 %v430
    %897 = vmatpush.msra.mxu0 %v429
    %898 = vmatpush.msra.mxu0 %v428
    %899 = vmatpush.msra.mxu0 %v427
    %900 = vmatpush.msra.mxu0 %v426
    %901 = vmatpush.msra.mxu0 %v425
    %902 = vmatpush.msra.mxu0 %v424
    %903 = vmatpush.msra.mxu0 %v423
    %904 = vmatpush.msra.mxu0 %v422
    %905 = vmatpush.msra.mxu0 %v421
    %906 = vmatmul.f32.gmra.mxu0 %v743
    %v907 = vpop.f32.mrf.mxu0
    %v908 = vadd.f32 %v888, %v907
    %909 = vdwg.mxu0
    %910 = vmatpush.msra.mxu0 %v452
    %911 = vmatpush.msra.mxu0 %v451
    %912 = vmatpush.msra.mxu0 %v450
    %913 = vmatpush.msra.mxu0 %v449
    %914 = vmatpush.msra.mxu0 %v448
    %915 = vmatpush.msra.mxu0 %v447
    %916 = vmatpush.msra.mxu0 %v446
    %917 = vmatpush.msra.mxu0 %v445
    %918 = vmatpush.msra.mxu0 %v444
    %919 = vmatpush.msra.mxu0 %v443
    %920 = vmatpush.msra.mxu0 %v442
    %921 = vmatpush.msra.mxu0 %v441
    %922 = vmatpush.msra.mxu0 %v440
    %923 = vmatpush.msra.mxu0 %v439
    %924 = vmatpush.msra.mxu0 %v438
    %925 = vmatpush.msra.mxu0 %v437
    %926 = vmatmul.f32.gmra.mxu0 %v744
    %v927 = vpop.f32.mrf.mxu0
    %v928 = vadd.f32 %v908, %v927
    %929 = vdwg.mxu0
    %930 = vmatpush.msra.mxu0 %v468
    %931 = vmatpush.msra.mxu0 %v467
    %932 = vmatpush.msra.mxu0 %v466
    %933 = vmatpush.msra.mxu0 %v465
    %934 = vmatpush.msra.mxu0 %v464
    %935 = vmatpush.msra.mxu0 %v463
    %936 = vmatpush.msra.mxu0 %v462
    %937 = vmatpush.msra.mxu0 %v461
    %938 = vmatpush.msra.mxu0 %v460
    %939 = vmatpush.msra.mxu0 %v459
    %940 = vmatpush.msra.mxu0 %v458
    %941 = vmatpush.msra.mxu0 %v457
    %942 = vmatpush.msra.mxu0 %v456
    %943 = vmatpush.msra.mxu0 %v455
    %944 = vmatpush.msra.mxu0 %v454
    %945 = vmatpush.msra.mxu0 %v453
    %946 = vmatmul.f32.gmra.mxu0 %v745
    %v947 = vpop.f32.mrf.mxu0
    %v948 = vadd.f32 %v928, %v947
    %949 = vdwg.mxu0
    %950 = vmatpush.msra.mxu0 %v484
    %951 = vmatpush.msra.mxu0 %v483
    %952 = vmatpush.msra.mxu0 %v482
    %953 = vmatpush.msra.mxu0 %v481
    %954 = vmatpush.msra.mxu0 %v480
    %955 = vmatpush.msra.mxu0 %v479
    %956 = vmatpush.msra.mxu0 %v478
    %957 = vmatpush.msra.mxu0 %v477
    %958 = vmatpush.msra.mxu0 %v476
    %959 = vmatpush.msra.mxu0 %v475
    %960 = vmatpush.msra.mxu0 %v474
    %961 = vmatpush.msra.mxu0 %v473
    %962 = vmatpush.msra.mxu0 %v472
    %963 = vmatpush.msra.mxu0 %v471
    %964 = vmatpush.msra.mxu0 %v470
    %965 = vmatpush.msra.mxu0 %v469
    %966 = vmatmul.f32.gmra.mxu0 %v748
    %v967 = vpop.f32.mrf.mxu0
    %v968 = vadd.f32 %v948, %v967
    %969 = vdwg.mxu0
    %970 = vmatpush.msra.mxu0 %v500
    %971 = vmatpush.msra.mxu0 %v499
    %972 = vmatpush.msra.mxu0 %v498
    %973 = vmatpush.msra.mxu0 %v497
    %974 = vmatpush.msra.mxu0 %v496
    %975 = vmatpush.msra.mxu0 %v495
    %976 = vmatpush.msra.mxu0 %v494
    %977 = vmatpush.msra.mxu0 %v493
    %978 = vmatpush.msra.mxu0 %v492
    %979 = vmatpush.msra.mxu0 %v491
    %980 = vmatpush.msra.mxu0 %v490
    %981 = vmatpush.msra.mxu0 %v489
    %982 = vmatpush.msra.mxu0 %v488
    %983 = vmatpush.msra.mxu0 %v487
    %984 = vmatpush.msra.mxu0 %v486
    %985 = vmatpush.msra.mxu0 %v485
    %986 = vmatmul.f32.gmra.mxu0 %v749
    %v987 = vpop.f32.mrf.mxu0
    %v988 = vadd.f32 %v968, %v987
    %989 = vdwg.mxu0
    %990 = vmatpush.msra.mxu0 %v516
    %991 = vmatpush.msra.mxu0 %v515
    %992 = vmatpush.msra.mxu0 %v514
    %993 = vmatpush.msra.mxu0 %v513
    %994 = vmatpush.msra.mxu0 %v512
    %995 = vmatpush.msra.mxu0 %v511
    %996 = vmatpush.msra.mxu0 %v510
    %997 = vmatpush.msra.mxu0 %v509
    %998 = vmatpush.msra.mxu0 %v508
    %999 = vmatpush.msra.mxu0 %v507
    %1000 = vmatpush.msra.mxu0 %v506
    %1001 = vmatpush.msra.mxu0 %v505
    %1002 = vmatpush.msra.mxu0 %v504
    %1003 = vmatpush.msra.mxu0 %v503
    %1004 = vmatpush.msra.mxu0 %v502
    %1005 = vmatpush.msra.mxu0 %v501
    %1006 = vmatmul.f32.gmra.mxu0 %v750
    %v1007 = vpop.f32.mrf.mxu0
    %v1008 = vadd.f32 %v988, %v1007
    %1009 = vdwg.mxu0
    %1010 = vmatpush.msra.mxu0 %v532
    %1011 = vmatpush.msra.mxu0 %v531
    %1012 = vmatpush.msra.mxu0 %v530
    %1013 = vmatpush.msra.mxu0 %v529
    %1014 = vmatpush.msra.mxu0 %v528
    %1015 = vmatpush.msra.mxu0 %v527
    %1016 = vmatpush.msra.mxu0 %v526
    %1017 = vmatpush.msra.mxu0 %v525
    %1018 = vmatpush.msra.mxu0 %v524
    %1019 = vmatpush.msra.mxu0 %v523
    %1020 = vmatpush.msra.mxu0 %v522
    %1021 = vmatpush.msra.mxu0 %v521
    %1022 = vmatpush.msra.mxu0 %v520
    %1023 = vmatpush.msra.mxu0 %v519
    %1024 = vmatpush.msra.mxu0 %v518
    %1025 = vmatpush.msra.mxu0 %v517
    %1026 = vmatmul.f32.gmra.mxu0 %v751
    %v1027 = vpop.f32.mrf.mxu0
    %v1028 = vadd.f32 %v1008, %v1027
    %1029 = vdwg.mxu0
    %1030 = vmatpush.msra.mxu0 %v548
    %1031 = vmatpush.msra.mxu0 %v547
    %1032 = vmatpush.msra.mxu0 %v546
    %1033 = vmatpush.msra.mxu0 %v545
    %1034 = vmatpush.msra.mxu0 %v544
    %1035 = vmatpush.msra.mxu0 %v543
    %1036 = vmatpush.msra.mxu0 %v542
    %1037 = vmatpush.msra.mxu0 %v541
    %1038 = vmatpush.msra.mxu0 %v540
    %1039 = vmatpush.msra.mxu0 %v539
    %1040 = vmatpush.msra.mxu0 %v538
    %1041 = vmatpush.msra.mxu0 %v537
    %1042 = vmatpush.msra.mxu0 %v536
    %1043 = vmatpush.msra.mxu0 %v535
    %1044 = vmatpush.msra.mxu0 %v534
    %1045 = vmatpush.msra.mxu0 %v533
    %1046 = vmatmul.f32.gmra.mxu0 %v752
    %v1047 = vpop.f32.mrf.mxu0
    %v1048 = vadd.f32 %v1028, %v1047
    %1049 = vdwg.mxu0
    %1050 = vmatpush.msra.mxu0 %v564
    %1051 = vmatpush.msra.mxu0 %v563
    %1052 = vmatpush.msra.mxu0 %v562
    %1053 = vmatpush.msra.mxu0 %v561
    %1054 = vmatpush.msra.mxu0 %v560
    %1055 = vmatpush.msra.mxu0 %v559
    %1056 = vmatpush.msra.mxu0 %v558
    %1057 = vmatpush.msra.mxu0 %v557
    %1058 = vmatpush.msra.mxu0 %v556
    %1059 = vmatpush.msra.mxu0 %v555
    %1060 = vmatpush.msra.mxu0 %v554
    %1061 = vmatpush.msra.mxu0 %v553
    %1062 = vmatpush.msra.mxu0 %v552
    %1063 = vmatpush.msra.mxu0 %v551
    %1064 = vmatpush.msra.mxu0 %v550
    %1065 = vmatpush.msra.mxu0 %v549
    %1066 = vmatmul.f32.gmra.mxu0 %v753
    %v1067 = vpop.f32.mrf.mxu0
    %v1068 = vadd.f32 %v1048, %v1067
    %1069 = vdwg.mxu0
    %1070 = vmatpush.msra.mxu0 %v580
    %1071 = vmatpush.msra.mxu0 %v579
    %1072 = vmatpush.msra.mxu0 %v578
    %1073 = vmatpush.msra.mxu0 %v577
    %1074 = vmatpush.msra.mxu0 %v576
    %1075 = vmatpush.msra.mxu0 %v575
    %1076 = vmatpush.msra.mxu0 %v574
    %1077 = vmatpush.msra.mxu0 %v573
    %1078 = vmatpush.msra.mxu0 %v572
    %1079 = vmatpush.msra.mxu0 %v571
    %1080 = vmatpush.msra.mxu0 %v570
    %1081 = vmatpush.msra.mxu0 %v569
    %1082 = vmatpush.msra.mxu0 %v568
    %1083 = vmatpush.msra.mxu0 %v567
    %1084 = vmatpush.msra.mxu0 %v566
    %1085 = vmatpush.msra.mxu0 %v565
    %1086 = vmatmul.f32.gmra.mxu0 %v754
    %v1087 = vpop.f32.mrf.mxu0
    %v1088 = vadd.f32 %v1068, %v1087
    %1089 = vdwg.mxu0
    %1090 = vmatpush.msra.mxu0 %v596
    %1091 = vmatpush.msra.mxu0 %v595
    %1092 = vmatpush.msra.mxu0 %v594
    %1093 = vmatpush.msra.mxu0 %v593
    %1094 = vmatpush.msra.mxu0 %v592
    %1095 = vmatpush.msra.mxu0 %v591
    %1096 = vmatpush.msra.mxu0 %v590
    %1097 = vmatpush.msra.mxu0 %v589
    %1098 = vmatpush.msra.mxu0 %v588
    %1099 = vmatpush.msra.mxu0 %v587
    %1100 = vmatpush.msra.mxu0 %v586
    %1101 = vmatpush.msra.mxu0 %v585
    %1102 = vmatpush.msra.mxu0 %v584
    %1103 = vmatpush.msra.mxu0 %v583
    %1104 = vmatpush.msra.mxu0 %v582
    %1105 = vmatpush.msra.mxu0 %v581
    %1106 = vmatmul.f32.gmra.mxu0 %v755
    %v1107 = vpop.f32.mrf.mxu0
    %v1108 = vadd.f32 %v1088, %v1107
    %1109 = vdwg.mxu0
    %1110 = vmatpush.msra.mxu0 %v612
    %1111 = vmatpush.msra.mxu0 %v611
    %1112 = vmatpush.msra.mxu0 %v610
    %1113 = vmatpush.msra.mxu0 %v609
    %1114 = vmatpush.msra.mxu0 %v608
    %1115 = vmatpush.msra.mxu0 %v607
    %1116 = vmatpush.msra.mxu0 %v606
    %1117 = vmatpush.msra.mxu0 %v605
    %1118 = vmatpush.msra.mxu0 %v604
    %1119 = vmatpush.msra.mxu0 %v603
    %1120 = vmatpush.msra.mxu0 %v602
    %1121 = vmatpush.msra.mxu0 %v601
    %1122 = vmatpush.msra.mxu0 %v600
    %1123 = vmatpush.msra.mxu0 %v599
    %1124 = vmatpush.msra.mxu0 %v598
    %1125 = vmatpush.msra.mxu0 %v597
    %1126 = vmatmul.f32.gmra.mxu0 %v758
    %v1127 = vpop.f32.mrf.mxu0
    %v1128 = vadd.f32 %v1108, %v1127
    %1129 = vdwg.mxu0
    %1130 = vmatpush.msra.mxu0 %v628
    %1131 = vmatpush.msra.mxu0 %v627
    %1132 = vmatpush.msra.mxu0 %v626
    %1133 = vmatpush.msra.mxu0 %v625
    %1134 = vmatpush.msra.mxu0 %v624
    %1135 = vmatpush.msra.mxu0 %v623
    %1136 = vmatpush.msra.mxu0 %v622
    %1137 = vmatpush.msra.mxu0 %v621
    %1138 = vmatpush.msra.mxu0 %v620
    %1139 = vmatpush.msra.mxu0 %v619
    %1140 = vmatpush.msra.mxu0 %v618
    %1141 = vmatpush.msra.mxu0 %v617
    %1142 = vmatpush.msra.mxu0 %v616
    %1143 = vmatpush.msra.mxu0 %v615
    %1144 = vmatpush.msra.mxu0 %v614
    %1145 = vmatpush.msra.mxu0 %v613
    %1146 = vmatmul.f32.gmra.mxu0 %v759
    %v1147 = vpop.f32.mrf.mxu0
    %v1148 = vadd.f32 %v1128, %v1147
    %1149 = vdwg.mxu0
    %1150 = vmatpush.msra.mxu0 %v644
    %1151 = vmatpush.msra.mxu0 %v643
    %1152 = vmatpush.msra.mxu0 %v642
    %1153 = vmatpush.msra.mxu0 %v641
    %1154 = vmatpush.msra.mxu0 %v640
    %1155 = vmatpush.msra.mxu0 %v639
    %1156 = vmatpush.msra.mxu0 %v638
    %1157 = vmatpush.msra.mxu0 %v637
    %1158 = vmatpush.msra.mxu0 %v636
    %1159 = vmatpush.msra.mxu0 %v635
    %1160 = vmatpush.msra.mxu0 %v634
    %1161 = vmatpush.msra.mxu0 %v633
    %1162 = vmatpush.msra.mxu0 %v632
    %1163 = vmatpush.msra.mxu0 %v631
    %1164 = vmatpush.msra.mxu0 %v630
    %1165 = vmatpush.msra.mxu0 %v629
    %1166 = vmatmul.f32.gmra.mxu0 %v760
    %v1167 = vpop.f32.mrf.mxu0
    %v1168 = vadd.f32 %v1148, %v1167
    %1169 = vdwg.mxu0
    %1170 = vmatpush.msra.mxu0 %v660
    %1171 = vmatpush.msra.mxu0 %v659
    %1172 = vmatpush.msra.mxu0 %v658
    %1173 = vmatpush.msra.mxu0 %v657
    %1174 = vmatpush.msra.mxu0 %v656
    %1175 = vmatpush.msra.mxu0 %v655
    %1176 = vmatpush.msra.mxu0 %v654
    %1177 = vmatpush.msra.mxu0 %v653
    %1178 = vmatpush.msra.mxu0 %v652
    %1179 = vmatpush.msra.mxu0 %v651
    %1180 = vmatpush.msra.mxu0 %v650
    %1181 = vmatpush.msra.mxu0 %v649
    %1182 = vmatpush.msra.mxu0 %v648
    %1183 = vmatpush.msra.mxu0 %v647
    %1184 = vmatpush.msra.mxu0 %v646
    %1185 = vmatpush.msra.mxu0 %v645
    %1186 = vmatmul.f32.gmra.mxu0 %v761
    %v1187 = vpop.f32.mrf.mxu0
    %v1188 = vadd.f32 %v1168, %v1187
    %1189 = vdwg.mxu0
    %1190 = vmatpush.msra.mxu0 %v676
    %1191 = vmatpush.msra.mxu0 %v675
    %1192 = vmatpush.msra.mxu0 %v674
    %1193 = vmatpush.msra.mxu0 %v673
    %1194 = vmatpush.msra.mxu0 %v672
    %1195 = vmatpush.msra.mxu0 %v671
    %1196 = vmatpush.msra.mxu0 %v670
    %1197 = vmatpush.msra.mxu0 %v669
    %1198 = vmatpush.msra.mxu0 %v668
    %1199 = vmatpush.msra.mxu0 %v667
    %1200 = vmatpush.msra.mxu0 %v666
    %1201 = vmatpush.msra.mxu0 %v665
    %1202 = vmatpush.msra.mxu0 %v664
    %1203 = vmatpush.msra.mxu0 %v663
    %1204 = vmatpush.msra.mxu0 %v662
    %1205 = vmatpush.msra.mxu0 %v661
    %1206 = vmatmul.f32.gmra.mxu0 %v762
    %v1207 = vpop.f32.mrf.mxu0
    %v1208 = vadd.f32 %v1188, %v1207
    %1209 = vdwg.mxu0
    %1210 = vmatpush.msra.mxu0 %v692
    %1211 = vmatpush.msra.mxu0 %v691
    %1212 = vmatpush.msra.mxu0 %v690
    %1213 = vmatpush.msra.mxu0 %v689
    %1214 = vmatpush.msra.mxu0 %v688
    %1215 = vmatpush.msra.mxu0 %v687
    %1216 = vmatpush.msra.mxu0 %v686
    %1217 = vmatpush.msra.mxu0 %v685
    %1218 = vmatpush.msra.mxu0 %v684
    %1219 = vmatpush.msra.mxu0 %v683
    %1220 = vmatpush.msra.mxu0 %v682
    %1221 = vmatpush.msra.mxu0 %v681
    %1222 = vmatpush.msra.mxu0 %v680
    %1223 = vmatpush.msra.mxu0 %v679
    %1224 = vmatpush.msra.mxu0 %v678
    %1225 = vmatpush.msra.mxu0 %v677
    %1226 = vmatmul.f32.gmra.mxu0 %v763
    %v1227 = vpop.f32.mrf.mxu0
    %v1228 = vadd.f32 %v1208, %v1227
    %1229 = vdwg.mxu0
    %1230 = vmatpush.msra.mxu0 %v708
    %1231 = vmatpush.msra.mxu0 %v707
    %1232 = vmatpush.msra.mxu0 %v706
    %1233 = vmatpush.msra.mxu0 %v705
    %1234 = vmatpush.msra.mxu0 %v704
    %1235 = vmatpush.msra.mxu0 %v703
    %1236 = vmatpush.msra.mxu0 %v702
    %1237 = vmatpush.msra.mxu0 %v701
    %1238 = vmatpush.msra.mxu0 %v700
    %1239 = vmatpush.msra.mxu0 %v699
    %1240 = vmatpush.msra.mxu0 %v698
    %1241 = vmatpush.msra.mxu0 %v697
    %1242 = vmatpush.msra.mxu0 %v696
    %1243 = vmatpush.msra.mxu0 %v695
    %1244 = vmatpush.msra.mxu0 %v694
    %1245 = vmatpush.msra.mxu0 %v693
    %1246 = vmatmul.f32.gmra.mxu0 %v764
    %v1247 = vpop.f32.mrf.mxu0
    %v1248 = vadd.f32 %v1228, %v1247
    %1249 = vdwg.mxu0
    %1250 = vmatpush.msra.mxu0 %v724
    %1251 = vmatpush.msra.mxu0 %v723
    %1252 = vmatpush.msra.mxu0 %v722
    %1253 = vmatpush.msra.mxu0 %v721
    %1254 = vmatpush.msra.mxu0 %v720
    %1255 = vmatpush.msra.mxu0 %v719
    %1256 = vmatpush.msra.mxu0 %v718
    %1257 = vmatpush.msra.mxu0 %v717
    %1258 = vmatpush.msra.mxu0 %v716
    %1259 = vmatpush.msra.mxu0 %v715
    %1260 = vmatpush.msra.mxu0 %v714
    %1261 = vmatpush.msra.mxu0 %v713
    %1262 = vmatpush.msra.mxu0 %v712
    %1263 = vmatpush.msra.mxu0 %v711
    %1264 = vmatpush.msra.mxu0 %v710
    %1265 = vmatpush.msra.mxu0 %v709
    %1266 = vmatmul.f32.gmra.mxu0 %v765
    %v1267 = vpop.f32.mrf.mxu0
    %v1268 = vadd.f32 %v1248, %v1267
    %1269 = vdwg.mxu0
    %v1270 = vsub.f32 0.0, %v1268
    %v1271 = vmul.f32 %v1270, 1.442695
    %v1272 = vpow.pop %v1271
    %v1273 = vadd.f32 %v1272, 1.0
    %v1274 = vrcp.pop %v1273
    %v1275 = vmul.f32 %v1273, %v1274
    %v1276 = vsub.f32 1.0, %v1275
    %v1277 = vmul.f32 %v1274, %v1276
    %v1278 = vadd.f32 %v1274, %v1277
    %vm1279 = vweird.f32 %v1273
    %vm1280 = vweird.f32 %v1274
    %vm1281 = vmor %vm1279, %vm1280
    %v1282 = vsel %vm1281, %v1274, %v1278
    %v1283 = vand.u32 2147483647, %v1273
    %vm1284 = vcmp.eq.f32.partialorder %v1283, 8.507059e+37
    %v1285 = vand.u32 %v1273, 2147483648
    %v1286 = vor.u32 1.1754944e-38, %v1285
    %v1287 = vsel %vm1284, %v1286, %v1282
    %v1288 = vmul.f32 1.0, %v1287
    %v1289 = vld [vmem:[%s3] sm:$0xff]
    %v1290 = vld [vmem:[%s3 + $0x8] sm:$0xff]
    %v1291 = vld [vmem:[%s3 + $0x10] sm:$0xff]
    %v1292 = vld [vmem:[%s3 + $0x18] sm:$0xff]
    %v1293 = vld [vmem:[%s3 + $0x20] sm:$0xff]
    %v1294 = vld [vmem:[%s3 + $0x28] sm:$0xff]
    %v1295 = vld [vmem:[%s3 + $0x30] sm:$0xff]
    %v1296 = vld [vmem:[%s3 + $0x38] sm:$0xff]
    %v1297 = vld [vmem:[%s3 + $0x40] sm:$0xff]
    %v1298 = vld [vmem:[%s3 + $0x48] sm:$0xff]
    %v1299 = vld [vmem:[%s3 + $0x50] sm:$0xff]
    %v1300 = vld [vmem:[%s3 + $0x58] sm:$0xff]
    %v1301 = vld [vmem:[%s3 + $0x60] sm:$0xff]
    %v1302 = vld [vmem:[%s3 + $0x68] sm:$0xff]
    %v1303 = vld [vmem:[%s3 + $0x70] sm:$0xff]
    %v1304 = vld [vmem:[%s3 + $0x78] sm:$0xff]
    %v1305 = vld [vmem:[#allocation7] sm:$0x1]
    %v1307 = vperm.slane %v1305, 0
    %1309 = vmatpush.msra.mxu0 %v1304
    %1310 = vmatpush.msra.mxu0 %v1303
    %1311 = vmatpush.msra.mxu0 %v1302
    %1312 = vmatpush.msra.mxu0 %v1301
    %1313 = vmatpush.msra.mxu0 %v1300
    %1314 = vmatpush.msra.mxu0 %v1299
    %1315 = vmatpush.msra.mxu0 %v1298
    %1316 = vmatpush.msra.mxu0 %v1297
    %1317 = vmatpush.msra.mxu0 %v1296
    %1318 = vmatpush.msra.mxu0 %v1295
    %1319 = vmatpush.msra.mxu0 %v1294
    %1320 = vmatpush.msra.mxu0 %v1293
    %1321 = vmatpush.msra.mxu0 %v1292
    %1322 = vmatpush.msra.mxu0 %v1291
    %1323 = vmatpush.msra.mxu0 %v1290
    %1324 = vmatpush.msra.mxu0 %v1289
    %1325 = vmatmul.f32.gmra.mxu0 %v1288
    %v1326 = vpop.f32.mrf.mxu0
    %v1327 = vadd.f32 %v1307, %v1326
    %1328 = vdwg.mxu0
    %vm1329 = vcmask 9216
    %v1330 = vsel %vm1329, %v1327, -inf
    %1331 = vmax.xlane.f32.xlu0 %v1330
    %v1332 = vpop.xlane.xlu0 %1331
    %v1333 = vsub.f32 %v1327, %v1332
    %v1334 = vmul.f32 %v1333, 1.442695
    %v1335 = vpow.pop %v1334
    %v1336 = vsel %vm1329, %v1335, 0.0
    %1337 = vadd.xlane.f32.xlu0 %v1336
    %v1338 = vpop.xlane.xlu0 %1337
    %v1339 = vrcp.pop %v1338
    %v1340 = vmul.f32 %v1338, %v1339
    %v1341 = vsub.f32 1.0, %v1340
    %v1342 = vmul.f32 %v1339, %v1341
    %v1343 = vadd.f32 %v1339, %v1342
    %vm1344 = vweird.f32 %v1338
    %vm1345 = vweird.f32 %v1339
    %vm1346 = vmor %vm1344, %vm1345
    %v1347 = vsel %vm1346, %v1339, %v1343
    %v1348 = vand.u32 2147483647, %v1338
    %vm1349 = vcmp.eq.f32.partialorder %v1348, 8.507059e+37
    %v1350 = vand.u32 %v1338, 2147483648
    %v1351 = vor.u32 1.1754944e-38, %v1350
    %v1352 = vsel %vm1349, %v1351, %v1347
    %v1353 = vmul.f32 %v1335, %v1352
    %1354 = vst.msk [vmem:[#allocation8] sm:$0x3] %vm1329, %v1353
    // Predicated region
    $region34: #{pfedmoe_gate_forward.1} parent=1 // pred_check
      _
    $region35: #{pfedmoe_gate_forward.1} parent=1 // pred_check_branch
      %1356 = sbr.rel (0) target = $region37
    $region36: #{pfedmoe_gate_forward.1} parent=1 // pred_region
      %1358 = vsyncadd [#allocation4], 0
      %s1360 = sshll.u32 [#allocation8], 4
      %s1361 = int_to_ptr.vmem [resolvable:$true] %s1360
      %s1362 = sshll.u32 %s5, 4
      %s1363 = int_to_ptr.hbm [resolvable:$true] %s1362
      %1365 = dma.vmem_to_hbm [thread:$0]  %s1361, 32, %s1363, [#allocation4]
    $region37: #{pfedmoe_gate_forward.1} parent=1 // pred_fallthru
      _
    // Predicated region
    $region38: #{pfedmoe_gate_forward.1} parent=1 // pred_check
      _
    $region39: #{pfedmoe_gate_forward.1} parent=1 // pred_check_branch
      %1367 = sbr.rel (0) target = $region41
    $region40: #{pfedmoe_gate_forward.1} parent=1 // pred_region
      %1369 = dma.done [#allocation4], 32
    $region41: #{pfedmoe_gate_forward.1} parent=1 // pred_fallthru
      _
    %1370 = vsyncpa [#allocation3], 1
    %1371 = vsyncpa [#allocation6], 1
    %1372 = vsyncpa [#allocation4], 1

</llo_original>
